<compile_context>
chip_gen: v7x
topology: tpu7x:2x2x1
jax: 0.10.0
libtpu: 0.0.40
codegen_flags: <defaults>
</compile_context>

<pallas_src>
import functools

import jax
import jax.numpy as jnp
from jax import lax
from jax.experimental import pallas as pl
from jax.experimental.pallas import tpu as pltpu

LRELU_SLOPE = 0.2
EPS = 1e-5


def _round_up(x, m):
    return (x + m - 1) // m * m


# ----------------------------- Pallas kernels -----------------------------
def _make_stats_kernel(tm, m_valid, m_padded):
    """Pass 1: h2 = conv2(lrelu(conv1(x))); accumulate per-channel sum / sumsq."""
    needs_mask = m_padded != m_valid

    def kernel(x_ref, w1_ref, b1_ref, w2_ref, sum_ref, ssq_ref):
        i = pl.program_id(0)

        @pl.when(i == 0)
        def _():
            sum_ref[...] = jnp.zeros_like(sum_ref)
            ssq_ref[...] = jnp.zeros_like(ssq_ref)

        # conv1 (1x1, bias) + LeakyReLU(0.2):  [ndf, Cin] @ [Cin, TM]
        h1 = jnp.dot(w1_ref[...], x_ref[...],
                     preferred_element_type=jnp.float32) + b1_ref[...]
        a1 = jnp.where(h1 >= 0, h1, LRELU_SLOPE * h1)
        # conv2 (1x1, no bias):  [2ndf, ndf] @ [ndf, TM]
        h2 = jnp.dot(w2_ref[...], a1.astype(jnp.bfloat16),
                     preferred_element_type=jnp.float32)
        if needs_mask:  # zero padded columns so they don't pollute the stats
            col = i * tm + lax.broadcasted_iota(jnp.int32, (1, tm), 1)
            h2 = jnp.where(col < m_valid, h2, 0.0)
        sum_ref[...] += jnp.sum(h2, axis=1, keepdims=True)
        ssq_ref[...] += jnp.sum(h2 * h2, axis=1, keepdims=True)

    return kernel


def _main_kernel(x_ref, w1_ref, b1_ref, w2s_ref, shift_ref, w3_ref, o_ref):
    """Pass 2: conv1+lrelu -> (scale-folded) conv2 + shift -> lrelu -> conv3."""
    h1 = jnp.dot(w1_ref[...], x_ref[...],
                 preferred_element_type=jnp.float32) + b1_ref[...]
    a1 = jnp.where(h1 >= 0, h1, LRELU_SLOPE * h1)
    # conv2 with the BatchNorm scale already folded into the weights (host side):
    #   bn = (gamma*inv) * (w2 @ a1) + shift == (w2*scale) @ a1 + shift
    bn = jnp.dot(w2s_ref[...], a1.astype(jnp.bfloat16),
                 preferred_element_type=jnp.float32) + shift_ref[...]
    a2 = jnp.where(bn >= 0, bn, LRELU_SLOPE * bn)
    # conv3 (1x1, no bias): [1, 2ndf] @ [2ndf, TM] -> lane-dense [1, TM] output.
    o_ref[...] = jnp.dot(w3_ref[...], a2.astype(jnp.bfloat16),
                         preferred_element_type=jnp.float32)


# ----------------------------- JAX wrapper -----------------------------
def pixel_discriminator_forward(x_nchw, w1, b1, w2, gamma, beta, w3, *, tm=2048):
    """x_nchw: [N, Cin, H, W] (PyTorch layout).  Returns [N, 1, H, W]."""
    N, Cin, H, W = x_nchw.shape
    ndf = w1.shape[0]
    C2 = w2.shape[0]
    M = N * H * W

    # Lane-dense per-pixel layout: [Cin, M]  (1x1 convs == per-pixel MLP).
    x_t = jnp.transpose(x_nchw, (1, 0, 2, 3)).reshape(Cin, M)

    tm_eff = min(tm, _round_up(M, 128))
    Mp = _round_up(M, tm_eff)
    nt = Mp // tm_eff
    if Mp != M:
        x_t = jnp.pad(x_t, ((0, 0), (0, Mp - M)))

    # bf16 matmul operands, f32 accumulation / epilogue.
    xb = x_t.astype(jnp.bfloat16)
    w1_f = w1.reshape(ndf, Cin).astype(jnp.float32)
    w2_f = w2.reshape(C2, ndf).astype(jnp.float32)
    w1_m = w1_f.astype(jnp.bfloat16)
    b1_c = b1.reshape(ndf, 1).astype(jnp.float32)
    w2_m = w2_f.astype(jnp.bfloat16)
    w3_m = w3.reshape(1, C2).astype(jnp.bfloat16)

    full = lambda shape: pl.BlockSpec(shape, lambda i: (0, 0))

    # ---- pass 1: BatchNorm batch statistics of the pre-norm conv2 output ----
    ssum, ssq = pl.pallas_call(
        _make_stats_kernel(tm_eff, M, Mp),
        out_shape=(jax.ShapeDtypeStruct((C2, 1), jnp.float32),
                   jax.ShapeDtypeStruct((C2, 1), jnp.float32)),
        grid=(nt,),
        in_specs=[pl.BlockSpec((Cin, tm_eff), lambda i: (0, i)),
                  full((ndf, Cin)), full((ndf, 1)), full((C2, ndf))],
        out_specs=(full((C2, 1)), full((C2, 1))),
        compiler_params=pltpu.CompilerParams(
            dimension_semantics=("arbitrary",)),
    )(xb, w1_m, b1_c, w2_m)

    mean = ssum[:, 0] / M
    var = ssq[:, 0] / M - mean * mean          # biased variance (PyTorch BN fwd)
    inv = lax.rsqrt(var + EPS)
    scale = (gamma.astype(jnp.float32) * inv)                    # [C2]
    shift = (beta.astype(jnp.float32) - mean * scale).reshape(C2, 1)
    # Fold the BN scale into the conv2 weight (single bf16 rounding from f32).
    w2_scaled = (w2_f * scale[:, None]).astype(jnp.bfloat16)

    # ---- pass 2: full forward with folded BatchNorm, lane-dense output ----
    out_flat = pl.pallas_call(
        _main_kernel,
        out_shape=jax.ShapeDtypeStruct((1, Mp), jnp.float32),
        grid=(nt,),
        in_specs=[pl.BlockSpec((Cin, tm_eff), lambda i: (0, i)),
                  full((ndf, Cin)), full((ndf, 1)), full((C2, ndf)),
                  full((C2, 1)), full((1, C2))],
        out_specs=pl.BlockSpec((1, tm_eff), lambda i: (0, i)),
        compiler_params=pltpu.CompilerParams(
            dimension_semantics=("parallel",)),
    )(xb, w1_m, b1_c, w2_scaled, shift, w3_m)

    return out_flat[0, :M].reshape(N, H, W)[:, None, :, :]


# ----------------------------- pure-JAX reference -----------------------------
def reference_forward(x, w1, b1, w2, gamma, beta, w3):
    Cin = x.shape[1]
    ndf = w1.shape[0]
    C2 = w2.shape[0]
    lrelu = lambda t: jnp.where(t >= 0, t, LRELU_SLOPE * t)
    h1 = jnp.einsum('oi,nihw->nohw', w1.reshape(ndf, Cin), x,
                    precision=lax.Precision.HIGHEST) + b1.reshape(1, ndf, 1, 1)
    a1 = lrelu(h1)
    h2 = jnp.einsum('oi,nihw->nohw', w2.reshape(C2, ndf), a1,
                    precision=lax.Precision.HIGHEST)
    mean = jnp.mean(h2, axis=(0, 2, 3), keepdims=True)
    var = jnp.mean(jnp.square(h2 - mean), axis=(0, 2, 3), keepdims=True)
    bn = ((h2 - mean) * lax.rsqrt(var + EPS) * gamma.reshape(1, C2, 1, 1)
          + beta.reshape(1, C2, 1, 1))
    a2 = lrelu(bn)
    return jnp.einsum('oi,nihw->nohw', w3.reshape(1, C2), a2,
                      precision=lax.Precision.HIGHEST)


# ----------------------------- main -----------------------------
if __name__ == "__main__":
    key = jax.random.PRNGKey(0)
    k_x, k_w1, k_b1, k_w2, k_g, k_b, k_w3 = jax.random.split(key, 7)

    N, INPUT_NC, H, W = 2, 4, 16, 16
    NDF = 32                                    # ndf (small test size)

    x = jax.random.normal(k_x, (N, INPUT_NC, H, W), jnp.float32)
    w1 = 0.5 * jax.random.normal(k_w1, (NDF, INPUT_NC, 1, 1), jnp.float32)
    b1 = 0.1 * jax.random.normal(k_b1, (NDF,), jnp.float32)
    w2 = 0.2 * jax.random.normal(k_w2, (2 * NDF, NDF, 1, 1), jnp.float32)
    gamma = 1.0 + 0.1 * jax.random.normal(k_g, (2 * NDF,), jnp.float32)
    beta = 0.1 * jax.random.normal(k_b, (2 * NDF,), jnp.float32)
    w3 = 0.15 * jax.random.normal(k_w3, (1, 2 * NDF, 1, 1), jnp.float32)

    fwd = jax.jit(functools.partial(pixel_discriminator_forward))
    out = jax.block_until_ready(fwd(x, w1, b1, w2, gamma, beta, w3))

    ref = reference_forward(x, w1, b1, w2, gamma, beta, w3)
    assert out.shape == (N, 1, H, W), out.shape
    # bf16 matmul operands -> up to ~1e-2 deviation vs the all-f32 reference.
    err = float(jnp.max(jnp.abs(out - ref)))
    assert jnp.allclose(out, ref, atol=5e-2, rtol=5e-2), err

    print("KERNEL_OK")
</pallas_src>

<mosaic_0001>
module attributes {stable_mosaic.version = 11 : i64} {
  func.func @kernel(%arg0: i32, %arg1: memref<4x512xbf16, #tpu.memory_space<vmem>>, %arg2: memref<32x4xbf16, #tpu.memory_space<vmem>>, %arg3: memref<32x1xf32, #tpu.memory_space<vmem>>, %arg4: memref<64x32xbf16, #tpu.memory_space<vmem>>, %arg5: memref<64x1xf32, #tpu.memory_space<vmem>>, %arg6: memref<64x1xf32, #tpu.memory_space<vmem>>) attributes {dimension_semantics = [#tpu.dimension_semantics<arbitrary>], iteration_bounds = array<i64: 1>, scalar_prefetch = 0 : i64, scratch_operands = 0 : i64, tpu.core_type = #tpu.core_type<tc>, window_params = [{transform_indices = @transform_0, window_bounds = array<i64: 4, 512>}, {pipeline_mode = #tpu.pipeline_mode<synchronous>, transform_indices = @transform_1, window_bounds = array<i64: 32, 4>}, {pipeline_mode = #tpu.pipeline_mode<synchronous>, transform_indices = @transform_2, window_bounds = array<i64: 32, 1>}, {pipeline_mode = #tpu.pipeline_mode<synchronous>, transform_indices = @transform_3, window_bounds = array<i64: 64, 32>}, {pipeline_mode = #tpu.pipeline_mode<synchronous>, transform_indices = @transform_4, window_bounds = array<i64: 64, 1>}, {pipeline_mode = #tpu.pipeline_mode<synchronous>, transform_indices = @transform_5, window_bounds = array<i64: 64, 1>}]} {
    %c0_i32 = arith.constant 0 : i32
    %0 = arith.cmpi eq, %arg0, %c0_i32 : i32
    %1 = arith.extui %0 : i1 to i32
    %c0_i32_0 = arith.constant 0 : i32
    %2 = arith.cmpi ne, %1, %c0_i32_0 : i32
    scf.if %2 {
      %cst_21 = arith.constant 0.000000e+00 : f32
      %28 = vector.broadcast %cst_21 : f32 to vector<64x1xf32>
      %c0_22 = arith.constant 0 : index
      %c0_23 = arith.constant 0 : index
      %29 = vector.load %arg5[%c0_22, %c0_23] : memref<64x1xf32, #tpu.memory_space<vmem>>, vector<64x1xf32>
      tpu.vector_store %arg5[%c0_22, %c0_23], %28 {strides = array<i32>} : memref<64x1xf32, #tpu.memory_space<vmem>>, vector<64x1xf32>,
      %cst_24 = arith.constant 0.000000e+00 : f32
      %30 = vector.broadcast %cst_24 : f32 to vector<64x1xf32>
      %c0_25 = arith.constant 0 : index
      %c0_26 = arith.constant 0 : index
      %31 = vector.load %arg6[%c0_25, %c0_26] : memref<64x1xf32, #tpu.memory_space<vmem>>, vector<64x1xf32>
      tpu.vector_store %arg6[%c0_25, %c0_26], %30 {strides = array<i32>} : memref<64x1xf32, #tpu.memory_space<vmem>>, vector<64x1xf32>,
    } else {
    }
    %c0 = arith.constant 0 : index
    %c0_1 = arith.constant 0 : index
    %3 = vector.load %arg2[%c0, %c0_1] : memref<32x4xbf16, #tpu.memory_space<vmem>>, vector<32x4xbf16>
    %c0_2 = arith.constant 0 : index
    %c0_3 = arith.constant 0 : index
    %4 = vector.load %arg1[%c0_2, %c0_3] : memref<4x512xbf16, #tpu.memory_space<vmem>>, vector<4x512xbf16>
    %cst = arith.constant dense<0.000000e+00> : vector<32x512xf32>
    %5 = tpu.matmul %3, %4, %cst {dimension_numbers = #tpu.dot_dimension_numbers<[1], [0], [0], [1], [0, 0, 1, 1], [], []>} : vector<32x4xbf16>, vector<4x512xbf16>, vector<32x512xf32> -> vector<32x512xf32>
    %c0_4 = arith.constant 0 : index
    %c0_5 = arith.constant 0 : index
    %6 = vector.load %arg3[%c0_4, %c0_5] : memref<32x1xf32, #tpu.memory_space<vmem>>, vector<32x1xf32>
    %7 = vector.broadcast %6 : vector<32x1xf32> to vector<32x512xf32>
    %8 = arith.addf %5, %7 : vector<32x512xf32>
    %cst_6 = arith.constant 0.000000e+00 : f32
    %9 = vector.broadcast %cst_6 : f32 to vector<32x512xf32>
    %10 = arith.cmpf oge, %8, %9 : vector<32x512xf32>
    %cst_7 = arith.constant 2.000000e-01 : f32
    %11 = vector.broadcast %cst_7 : f32 to vector<32x512xf32>
    %12 = arith.mulf %11, %8 : vector<32x512xf32>
    %13 = arith.select %10, %8, %12 : vector<32x512xi1>, vector<32x512xf32>
    %c0_8 = arith.constant 0 : index
    %c0_9 = arith.constant 0 : index
    %14 = vector.load %arg4[%c0_8, %c0_9] : memref<64x32xbf16, #tpu.memory_space<vmem>>, vector<64x32xbf16>
    %15 = arith.truncf %13 : vector<32x512xf32> to vector<32x512xbf16>
    %cst_10 = arith.constant dense<0.000000e+00> : vector<64x512xf32>
    %16 = tpu.matmul %14, %15, %cst_10 {dimension_numbers = #tpu.dot_dimension_numbers<[1], [0], [0], [1], [0, 0, 1, 1], [], []>} : vector<64x32xbf16>, vector<32x512xbf16>, vector<64x512xf32> -> vector<64x512xf32>
    %c0_11 = arith.constant 0 : index
    %c0_12 = arith.constant 0 : index
    %17 = vector.load %arg5[%c0_11, %c0_12] : memref<64x1xf32, #tpu.memory_space<vmem>>, vector<64x1xf32>
    %cst_13 = arith.constant dense<0.000000e+00> : vector<64xf32>
    %18 = vector.multi_reduction <add>, %16, %cst_13 [1] : vector<64x512xf32> to vector<64xf32>
    %19 = vector.shape_cast %18 : vector<64xf32> to vector<64x1xf32>
    %20 = arith.addf %17, %19 : vector<64x1xf32>
    %c0_14 = arith.constant 0 : index
    %c0_15 = arith.constant 0 : index
    %21 = vector.load %arg5[%c0_14, %c0_15] : memref<64x1xf32, #tpu.memory_space<vmem>>, vector<64x1xf32>
    tpu.vector_store %arg5[%c0_14, %c0_15], %20 {strides = array<i32>} : memref<64x1xf32, #tpu.memory_space<vmem>>, vector<64x1xf32>,
    %c0_16 = arith.constant 0 : index
    %c0_17 = arith.constant 0 : index
    %22 = vector.load %arg6[%c0_16, %c0_17] : memref<64x1xf32, #tpu.memory_space<vmem>>, vector<64x1xf32>
    %23 = arith.mulf %16, %16 : vector<64x512xf32>
    %cst_18 = arith.constant dense<0.000000e+00> : vector<64xf32>
    %24 = vector.multi_reduction <add>, %23, %cst_18 [1] : vector<64x512xf32> to vector<64xf32>
    %25 = vector.shape_cast %24 : vector<64xf32> to vector<64x1xf32>
    %26 = arith.addf %22, %25 : vector<64x1xf32>
    %c0_19 = arith.constant 0 : index
    %c0_20 = arith.constant 0 : index
    %27 = vector.load %arg6[%c0_19, %c0_20] : memref<64x1xf32, #tpu.memory_space<vmem>>, vector<64x1xf32>
    tpu.vector_store %arg6[%c0_19, %c0_20], %26 {strides = array<i32>} : memref<64x1xf32, #tpu.memory_space<vmem>>, vector<64x1xf32>,
    return
  }
  func.func @transform_0(%arg0: i32) -> (i32, i32) {
    %c0_i32 = arith.constant 0 : i32
    %c0_i32_0 = arith.constant 0 : i32
    return %c0_i32, %arg0 : i32, i32
  }
  func.func @transform_1(%arg0: i32) -> (i32, i32) {
    %c0_i32 = arith.constant 0 : i32
    %c0_i32_0 = arith.constant 0 : i32
    %c0_i32_1 = arith.constant 0 : i32
    return %c0_i32, %c0_i32_0 : i32, i32
  }
  func.func @transform_2(%arg0: i32) -> (i32, i32) {
    %c0_i32 = arith.constant 0 : i32
    %c0_i32_0 = arith.constant 0 : i32
    %c0_i32_1 = arith.constant 0 : i32
    return %c0_i32, %c0_i32_0 : i32, i32
  }
  func.func @transform_3(%arg0: i32) -> (i32, i32) {
    %c0_i32 = arith.constant 0 : i32
    %c0_i32_0 = arith.constant 0 : i32
    %c0_i32_1 = arith.constant 0 : i32
    return %c0_i32, %c0_i32_0 : i32, i32
  }
  func.func @transform_4(%arg0: i32) -> (i32, i32) {
    %c0_i32 = arith.constant 0 : i32
    %c0_i32_0 = arith.constant 0 : i32
    %c0_i32_1 = arith.constant 0 : i32
    return %c0_i32, %c0_i32_0 : i32, i32
  }
  func.func @transform_5(%arg0: i32) -> (i32, i32) {
    %c0_i32 = arith.constant 0 : i32
    %c0_i32_0 = arith.constant 0 : i32
    %c0_i32_1 = arith.constant 0 : i32
    return %c0_i32, %c0_i32_0 : i32, i32
  }
}

module attributes {stable_mosaic.version = 11 : i64} {
  func.func @_main_kernel(%arg0: i32, %arg1: memref<4x512xbf16, #tpu.memory_space<vmem>>, %arg2: memref<32x4xbf16, #tpu.memory_space<vmem>>, %arg3: memref<32x1xf32, #tpu.memory_space<vmem>>, %arg4: memref<64x32xbf16, #tpu.memory_space<vmem>>, %arg5: memref<64x1xf32, #tpu.memory_space<vmem>>, %arg6: memref<1x64xbf16, #tpu.memory_space<vmem>>, %arg7: memref<1x512xf32, #tpu.memory_space<vmem>>) attributes {dimension_semantics = [#tpu.dimension_semantics<parallel>], iteration_bounds = array<i64: 1>, scalar_prefetch = 0 : i64, scratch_operands = 0 : i64, tpu.core_type = #tpu.core_type<tc>, window_params = [{transform_indices = @transform_0, window_bounds = array<i64: 4, 512>}, {pipeline_mode = #tpu.pipeline_mode<synchronous>, transform_indices = @transform_1, window_bounds = array<i64: 32, 4>}, {pipeline_mode = #tpu.pipeline_mode<synchronous>, transform_indices = @transform_2, window_bounds = array<i64: 32, 1>}, {pipeline_mode = #tpu.pipeline_mode<synchronous>, transform_indices = @transform_3, window_bounds = array<i64: 64, 32>}, {pipeline_mode = #tpu.pipeline_mode<synchronous>, transform_indices = @transform_4, window_bounds = array<i64: 64, 1>}, {pipeline_mode = #tpu.pipeline_mode<synchronous>, transform_indices = @transform_5, window_bounds = array<i64: 1, 64>}, {transform_indices = @transform_6, window_bounds = array<i64: 1, 512>}]} {
    %c0 = arith.constant 0 : index
    %c0_0 = arith.constant 0 : index
    %0 = vector.load %arg2[%c0, %c0_0] : memref<32x4xbf16, #tpu.memory_space<vmem>>, vector<32x4xbf16>
    %c0_1 = arith.constant 0 : index
    %c0_2 = arith.constant 0 : index
    %1 = vector.load %arg1[%c0_1, %c0_2] : memref<4x512xbf16, #tpu.memory_space<vmem>>, vector<4x512xbf16>
    %cst = arith.constant dense<0.000000e+00> : vector<32x512xf32>
    %2 = tpu.matmul %0, %1, %cst {dimension_numbers = #tpu.dot_dimension_numbers<[1], [0], [0], [1], [0, 0, 1, 1], [], []>} : vector<32x4xbf16>, vector<4x512xbf16>, vector<32x512xf32> -> vector<32x512xf32>
    %c0_3 = arith.constant 0 : index
    %c0_4 = arith.constant 0 : index
    %3 = vector.load %arg3[%c0_3, %c0_4] : memref<32x1xf32, #tpu.memory_space<vmem>>, vector<32x1xf32>
    %4 = vector.broadcast %3 : vector<32x1xf32> to vector<32x512xf32>
    %5 = arith.addf %2, %4 : vector<32x512xf32>
    %cst_5 = arith.constant 0.000000e+00 : f32
    %6 = vector.broadcast %cst_5 : f32 to vector<32x512xf32>
    %7 = arith.cmpf oge, %5, %6 : vector<32x512xf32>
    %cst_6 = arith.constant 2.000000e-01 : f32
    %8 = vector.broadcast %cst_6 : f32 to vector<32x512xf32>
    %9 = arith.mulf %8, %5 : vector<32x512xf32>
    %10 = arith.select %7, %5, %9 : vector<32x512xi1>, vector<32x512xf32>
    %c0_7 = arith.constant 0 : index
    %c0_8 = arith.constant 0 : index
    %11 = vector.load %arg4[%c0_7, %c0_8] : memref<64x32xbf16, #tpu.memory_space<vmem>>, vector<64x32xbf16>
    %12 = arith.truncf %10 : vector<32x512xf32> to vector<32x512xbf16>
    %cst_9 = arith.constant dense<0.000000e+00> : vector<64x512xf32>
    %13 = tpu.matmul %11, %12, %cst_9 {dimension_numbers = #tpu.dot_dimension_numbers<[1], [0], [0], [1], [0, 0, 1, 1], [], []>} : vector<64x32xbf16>, vector<32x512xbf16>, vector<64x512xf32> -> vector<64x512xf32>
    %c0_10 = arith.constant 0 : index
    %c0_11 = arith.constant 0 : index
    %14 = vector.load %arg5[%c0_10, %c0_11] : memref<64x1xf32, #tpu.memory_space<vmem>>, vector<64x1xf32>
    %15 = vector.broadcast %14 : vector<64x1xf32> to vector<64x512xf32>
    %16 = arith.addf %13, %15 : vector<64x512xf32>
    %cst_12 = arith.constant 0.000000e+00 : f32
    %17 = vector.broadcast %cst_12 : f32 to vector<64x512xf32>
    %18 = arith.cmpf oge, %16, %17 : vector<64x512xf32>
    %cst_13 = arith.constant 2.000000e-01 : f32
    %19 = vector.broadcast %cst_13 : f32 to vector<64x512xf32>
    %20 = arith.mulf %19, %16 : vector<64x512xf32>
    %21 = arith.select %18, %16, %20 : vector<64x512xi1>, vector<64x512xf32>
    %c0_14 = arith.constant 0 : index
    %c0_15 = arith.constant 0 : index
    %22 = vector.load %arg6[%c0_14, %c0_15] : memref<1x64xbf16, #tpu.memory_space<vmem>>, vector<1x64xbf16>
    %23 = arith.truncf %21 : vector<64x512xf32> to vector<64x512xbf16>
    %cst_16 = arith.constant dense<0.000000e+00> : vector<1x512xf32>
    %24 = tpu.matmul %22, %23, %cst_16 {dimension_numbers = #tpu.dot_dimension_numbers<[1], [0], [0], [1], [0, 0, 1, 1], [], []>} : vector<1x64xbf16>, vector<64x512xbf16>, vector<1x512xf32> -> vector<1x512xf32>
    %c0_17 = arith.constant 0 : index
    %c0_18 = arith.constant 0 : index
    %25 = vector.load %arg7[%c0_17, %c0_18] : memref<1x512xf32, #tpu.memory_space<vmem>>, vector<1x512xf32>
    tpu.vector_store %arg7[%c0_17, %c0_18], %24 {strides = array<i32>} : memref<1x512xf32, #tpu.memory_space<vmem>>, vector<1x512xf32>,
    return
  }
  func.func @transform_0(%arg0: i32) -> (i32, i32) {
    %c0_i32 = arith.constant 0 : i32
    %c0_i32_0 = arith.constant 0 : i32
    return %c0_i32, %arg0 : i32, i32
  }
  func.func @transform_1(%arg0: i32) -> (i32, i32) {
    %c0_i32 = arith.constant 0 : i32
    %c0_i32_0 = arith.constant 0 : i32
    %c0_i32_1 = arith.constant 0 : i32
    return %c0_i32, %c0_i32_0 : i32, i32
  }
  func.func @transform_2(%arg0: i32) -> (i32, i32) {
    %c0_i32 = arith.constant 0 : i32
    %c0_i32_0 = arith.constant 0 : i32
    %c0_i32_1 = arith.constant 0 : i32
    return %c0_i32, %c0_i32_0 : i32, i32
  }
  func.func @transform_3(%arg0: i32) -> (i32, i32) {
    %c0_i32 = arith.constant 0 : i32
    %c0_i32_0 = arith.constant 0 : i32
    %c0_i32_1 = arith.constant 0 : i32
    return %c0_i32, %c0_i32_0 : i32, i32
  }
  func.func @transform_4(%arg0: i32) -> (i32, i32) {
    %c0_i32 = arith.constant 0 : i32
    %c0_i32_0 = arith.constant 0 : i32
    %c0_i32_1 = arith.constant 0 : i32
    return %c0_i32, %c0_i32_0 : i32, i32
  }
  func.func @transform_5(%arg0: i32) -> (i32, i32) {
    %c0_i32 = arith.constant 0 : i32
    %c0_i32_0 = arith.constant 0 : i32
    %c0_i32_1 = arith.constant 0 : i32
    return %c0_i32, %c0_i32_0 : i32, i32
  }
  func.func @transform_6(%arg0: i32) -> (i32, i32) {
    %c0_i32 = arith.constant 0 : i32
    %c0_i32_0 = arith.constant 0 : i32
    return %c0_i32, %arg0 : i32, i32
  }
}

</mosaic_0001>

<llo_original>
// kernel: squeeze.5
$region0: #{squeeze.5}
  %s0 = inlined_call_operand.vmem [shape: f32[512], index: 0, kind: input, shape index: {}]
  %s1 = inlined_call_operand.hbm [shape: f32[2,1,16,16], index: 1, kind: output, shape index: {}]
  $region1: #{squeeze.5} parent=0
    #allocation0 [shape = 'u8[16384]{0}', space=vmem, size = 0x4000, scoped, tag = 'operand span for operand 1']
    #allocation1 [shape = 's32[1]{0}', space=sflag, size = 0x4, scoped, tag = 'scoped memory for squeeze.5']
    #allocation2 [shape = 'u8[4096]{0}', space=vmem, size = 0x1000, scoped, tag = 'scoped mem for input reshape']
    %2 = vsyncpa [#allocation1], 0
    %s4 = sshllo.u32 0, 4
    %v5 = vld [vmem:[%s0] sm:%s4]
    %6 = vst [vmem:[#allocation2] sm:%s4] %v5
    %v7 = vld [vmem:[#allocation2] sm:$0xf]
    %vm8 = vcmask 130048
    %9 = vst.msk [vmem:[#allocation0] ss:$8 sm:$0xf] %vm8, %v7
    %v10 = vld [vmem:[#allocation2] sm:$0xf]
    %11 = vrot.lane.b32.xlu0 %v10, 112
    %v12 = vpop.permute.xlu0 %11
    %vm13 = vcmask 130048
    %s14 = scalar_lea.vmem [#allocation0], 1
    %15 = vst.msk [vmem:[%s14] ss:$8 sm:$0xf] %vm13, %v12
    %v16 = vld [vmem:[#allocation2] sm:$0xf]
    %17 = vrot.lane.b32.xlu0 %v16, 96
    %v18 = vpop.permute.xlu0 %17
    %vm19 = vcmask 130048
    %s20 = scalar_lea.vmem [#allocation0], 2
    %21 = vst.msk [vmem:[%s20] ss:$8 sm:$0xf] %vm19, %v18
    %v22 = vld [vmem:[#allocation2] sm:$0xf]
    %23 = vrot.lane.b32.xlu0 %v22, 80
    %v24 = vpop.permute.xlu0 %23
    %vm25 = vcmask 130048
    %s26 = scalar_lea.vmem [#allocation0], 3
    %27 = vst.msk [vmem:[%s26] ss:$8 sm:$0xf] %vm25, %v24
    %v28 = vld [vmem:[#allocation2] sm:$0xf]
    %29 = vrot.lane.b32.xlu0 %v28, 64
    %v30 = vpop.permute.xlu0 %29
    %vm31 = vcmask 130048
    %s32 = scalar_lea.vmem [#allocation0], 4
    %33 = vst.msk [vmem:[%s32] ss:$8 sm:$0xf] %vm31, %v30
    %v34 = vld [vmem:[#allocation2] sm:$0xf]
    %35 = vrot.lane.b32.xlu0 %v34, 48
    %v36 = vpop.permute.xlu0 %35
    %vm37 = vcmask 130048
    %s38 = scalar_lea.vmem [#allocation0], 5
    %39 = vst.msk [vmem:[%s38] ss:$8 sm:$0xf] %vm37, %v36
    %v40 = vld [vmem:[#allocation2] sm:$0xf]
    %41 = vrot.lane.b32.xlu0 %v40, 32
    %v42 = vpop.permute.xlu0 %41
    %vm43 = vcmask 130048
    %s44 = scalar_lea.vmem [#allocation0], 6
    %45 = vst.msk [vmem:[%s44] ss:$8 sm:$0xf] %vm43, %v42
    %v46 = vld [vmem:[#allocation2] sm:$0xf]
    %47 = vrot.lane.b32.xlu0 %v46, 16
    %v48 = vpop.permute.xlu0 %47
    %vm49 = vcmask 130048
    %s50 = scalar_lea.vmem [#allocation0], 7
    %51 = vst.msk [vmem:[%s50] ss:$8 sm:$0xf] %vm49, %v48
    %s53 = ssub.s32 512, 512
    %54 = vsyncadd [#allocation1], %s53
    %s56 = sshll.u32 [#allocation0], 4
    %s57 = int_to_ptr.vmem [resolvable:$true] %s56
    %59 = dma.vmem_to_hbm [thread:$0]  %s57, 512, %s1, [#allocation1]
    %60 = dma.done [#allocation1], 512
    %61 = vsyncpa [#allocation1], 1

// kernel: pixel_discriminator_forward.2
$region0: #{pixel_discriminator_forward.2}
  #allocation0 [shape = 'u32[]', space=smem, size = 0x4, offset = 0x4, fixed_abs, tag = 'smem constant byte address 0x4 - core index']
  #allocation1 [shape = 'u32[144,128]{1,0:T(1,128)}', space=vmem, size = 0x12000, scoped, tag = 'internal scratch']
  %s0 = inlined_call_operand.vmem [shape: bf16[4,512], index: 0, kind: input, shape index: {}]
  %s1 = inlined_call_operand.vmem [shape: bf16[32,4], index: 1, kind: input, shape index: {}]
  %s2 = inlined_call_operand.vmem [shape: f32[32,1], index: 2, kind: input, shape index: {}]
  %s3 = inlined_call_operand.vmem [shape: bf16[64,32], index: 3, kind: input, shape index: {}]
  %s4 = inlined_call_operand.vmem [shape: f32[64,1], index: 4, kind: output, shape index: {0}]
  %s5 = inlined_call_operand.vmem [shape: f32[64,1], index: 5, kind: output, shape index: {1}]
  %6 = xla_tuple %s4, %s5
  %s7 = sld [smem:[#allocation0]]
  $region38: #{pixel_discriminator_forward.2} parent=0
    _
  %s9 = ssub.s32 1, %s7
  %s10 = scalar_select 0, %s9, %s7
  // Predicated region
  $region2: #{pixel_discriminator_forward.2} parent=0 // pred_check
    _
  $region3: #{pixel_discriminator_forward.2} parent=0 // pred_check_branch
    %12 = sbr.rel (0) target = $region5
  $region4: #{pixel_discriminator_forward.2} parent=0 // pred_region
    _
  $region5: #{pixel_discriminator_forward.2} parent=0 // pred_fallthru
    _
  // Predicated region
  $region6: #{pixel_discriminator_forward.2} parent=0 // pred_check
    _
  $region7: #{pixel_discriminator_forward.2} parent=0 // pred_check_branch
    %14 = sbr.rel (0) target = $region9
  $region8: #{pixel_discriminator_forward.2} parent=0 // pred_region
    _
  $region9: #{pixel_discriminator_forward.2} parent=0 // pred_fallthru
    _
  // Predicated region
  $region10: #{pixel_discriminator_forward.2} parent=0 // pred_check
    _
  $region11: #{pixel_discriminator_forward.2} parent=0 // pred_check_branch
    %16 = sbr.rel (0) target = $region13
  $region12: #{pixel_discriminator_forward.2} parent=0 // pred_region
    _
  $region13: #{pixel_discriminator_forward.2} parent=0 // pred_fallthru
    _
  // Predicated region
  $region14: #{pixel_discriminator_forward.2} parent=0 // pred_check
    _
  $region15: #{pixel_discriminator_forward.2} parent=0 // pred_check_branch
    %18 = sbr.rel (0) target = $region17
  $region16: #{pixel_discriminator_forward.2} parent=0 // pred_region
    _
  $region17: #{pixel_discriminator_forward.2} parent=0 // pred_fallthru
    _
  %p20 = scmp.eq.s32.totalorder 0, 0
  // Predicated region
  $region18: #{pixel_discriminator_forward.2} parent=0 // pred_check
    %p21 = pneg %p20
  $region19: #{pixel_discriminator_forward.2} parent=0 // pred_check_branch
    %23 = sbr.rel (%p21) target = $region21
  $region20: #{pixel_discriminator_forward.2} parent=0 // pred_region
    %vm24 = vcmask 7168
    %25 = vst.msk [vmem:[%s4] sm:$0xff] %vm24, 0.0
    %26 = vst.msk [vmem:[%s4 + $0x8] sm:$0xff] %vm24, 0.0
    %27 = vst.msk [vmem:[%s4 + $0x10] sm:$0xff] %vm24, 0.0
    %28 = vst.msk [vmem:[%s4 + $0x18] sm:$0xff] %vm24, 0.0
    %29 = vst.msk [vmem:[%s4 + $0x20] sm:$0xff] %vm24, 0.0
    %30 = vst.msk [vmem:[%s4 + $0x28] sm:$0xff] %vm24, 0.0
    %31 = vst.msk [vmem:[%s4 + $0x30] sm:$0xff] %vm24, 0.0
    %32 = vst.msk [vmem:[%s4 + $0x38] sm:$0xff] %vm24, 0.0
    %33 = vst.msk [vmem:[%s5] sm:$0xff] %vm24, 0.0
    %34 = vst.msk [vmem:[%s5 + $0x8] sm:$0xff] %vm24, 0.0
    %35 = vst.msk [vmem:[%s5 + $0x10] sm:$0xff] %vm24, 0.0
    %36 = vst.msk [vmem:[%s5 + $0x18] sm:$0xff] %vm24, 0.0
    %37 = vst.msk [vmem:[%s5 + $0x20] sm:$0xff] %vm24, 0.0
    %38 = vst.msk [vmem:[%s5 + $0x28] sm:$0xff] %vm24, 0.0
    %39 = vst.msk [vmem:[%s5 + $0x30] sm:$0xff] %vm24, 0.0
    %40 = vst.msk [vmem:[%s5 + $0x38] sm:$0xff] %vm24, 0.0
  $region21: #{pixel_discriminator_forward.2} parent=0 // pred_fallthru
    _
  %v41 = vld [vmem:[%s1] sm:$0xf]
  %v42 = vld [vmem:[%s1 + $0x4] sm:$0xf]
  %v43 = vld [vmem:[%s1 + $0x8] sm:$0xf]
  %v44 = vld [vmem:[%s1 + $0xc] sm:$0xf]
  %v45 = vld [vmem:[%s0] sm:$0xff]
  %v46 = vld [vmem:[%s2] sm:$0xff]
  %v47 = vld [vmem:[%s2 + $0x8] sm:$0xff]
  %v48 = vld [vmem:[%s2 + $0x10] sm:$0xff]
  %v49 = vld [vmem:[%s2 + $0x18] sm:$0xff]
  %51 = vset.pattern.permute.xlu0 0
  %52 = vperm.xlu0 %51, %v46
  %v53 = vpop.permute.xlu0 %52
  %56 = vset.pattern.permute.xlu0 0
  %57 = vperm.xlu0 %56, %v47
  %v58 = vpop.permute.xlu0 %57
  %61 = vset.pattern.permute.xlu0 0
  %62 = vperm.xlu0 %61, %v48
  %v63 = vpop.permute.xlu0 %62
  %66 = vset.pattern.permute.xlu0 0
  %67 = vperm.xlu0 %66, %v49
  %v68 = vpop.permute.xlu0 %67
  %v74 = vunpack.c.l.b16 %v41
  %v75 = vunpack.c.l.b16 %v42
  %v76 = vunpack.c.l.b16 %v43
  %v77 = vunpack.c.l.b16 %v44
  %v78 = vpack.c.b16 %v75, %v74
  %v79 = vpack.c.b16 %v77, %v76
  %v81 = vcombine.high %v45, %v45
  %v83 = vunpack.c.l.s4 1983009808
  %v84 = vunpack.c.0.s8 %v83
  %v85 = vlaneseq
  %v86 = vshrl.u32 %v85, 7
  %v87 = vsub.s32 %v84, %v86
  %v88 = vrot.slane %v45, %v87
  %v90 = vunpack.c.l.s4 1983009808
  %v91 = vunpack.c.0.s8 %v90
  %v92 = vlaneseq
  %v93 = vshrl.u32 %v92, 7
  %v94 = vsub.s32 %v91, %v93
  %v95 = vrot.slane %v81, %v94
  %v96 = vcombine.high %v88, %v88
  %v97 = vcombine.high %v95, %v95
  %vm98 = vcmask 31744
  %v100 = vsel %vm98, %v78, 0
  %v103 = vsel %vm98, %v79, 0
  %vm105 = vcmask 1041408
  %v107 = vsel %vm105, %v88, 0
  %v110 = vsel %vm105, %v96, 0
  %v113 = vsel %vm105, %v95, 0
  %v116 = vsel %vm105, %v97, 0
  %118 = vmatprep.subr.bf16.mxu0 %v110
  %119 = vmatpush1.bf16.msra.mxu0 %v107
  %120 = vmatprep.subr.bf16.mxu0 0
  %121 = vmatpush1.bf16.msra.mxu0 0
  %122 = vmatprep.subr.bf16.mxu0 0
  %123 = vmatpush1.bf16.msra.mxu0 0
  %124 = vmatprep.subr.bf16.mxu0 0
  %125 = vmatpush1.bf16.msra.mxu0 0
  %126 = vmatprep.subr.bf16.mxu0 0
  %127 = vmatpush1.bf16.msra.mxu0 0
  %128 = vmatprep.subr.bf16.mxu0 0
  %129 = vmatpush1.bf16.msra.mxu0 0
  %130 = vmatprep.subr.bf16.mxu0 0
  %131 = vmatpush1.bf16.msra.mxu0 0
  %132 = vmatprep.subr.bf16.mxu0 0
  %133 = vmatpush1.bf16.msra.mxu0 0
  %134 = vmatprep.subr.bf16.mxu0 0
  %135 = vmatpush1.bf16.msra.mxu0 0
  %136 = vmatprep.subr.bf16.mxu0 0
  %137 = vmatpush1.bf16.msra.mxu0 0
  %138 = vmatprep.subr.bf16.mxu0 0
  %139 = vmatpush1.bf16.msra.mxu0 0
  %140 = vmatprep.subr.bf16.mxu0 0
  %141 = vmatpush1.bf16.msra.mxu0 0
  %142 = vmatprep.subr.bf16.mxu0 0
  %143 = vmatpush1.bf16.msra.mxu0 0
  %144 = vmatprep.subr.bf16.mxu0 0
  %145 = vmatpush1.bf16.msra.mxu0 0
  %146 = vmatprep.subr.bf16.mxu0 0
  %147 = vmatpush1.bf16.msra.mxu0 0
  %148 = vmatprep.subr.bf16.mxu0 0
  %149 = vmatpush1.bf16.msra.mxu0 0
  %150 = vmatprep.mubr.bf16.mxu0 0
  %151 = vmatmul.mubr.bf16.gmra.mrb[0].mxu0 %v100
  %v152 = vpop.f32.mrb[0].mxu0
  %v153 = vadd.f32 %v53, %v152
  %v154 = vpop.f32.mrb[0].mxu0
  %v155 = vadd.f32 %v53, %v154
  %v156 = vpop.f32.mrb[0].mxu0
  %v157 = vadd.f32 %v58, %v156
  %v158 = vpop.f32.mrb[0].mxu0
  %v159 = vadd.f32 %v58, %v158
  %160 = vmatprep.mubr.bf16.mxu0 0
  %161 = vmatmul.mubr.bf16.gmra.mrb[0].mxu0 %v103
  %v162 = vpop.f32.mrb[0].mxu0
  %v163 = vadd.f32 %v63, %v162
  %v164 = vpop.f32.mrb[0].mxu0
  %v165 = vadd.f32 %v63, %v164
  %v166 = vpop.f32.mrb[0].mxu0
  %v167 = vadd.f32 %v68, %v166
  %v168 = vpop.f32.mrb[0].mxu0
  %v169 = vadd.f32 %v68, %v168
  %170 = vdwg.mxu0
  %171 = vmatprep.subr.bf16.mxu0 %v116
  %172 = vmatpush1.bf16.msra.mxu0 %v113
  %173 = vmatprep.subr.bf16.mxu0 0
  %174 = vmatpush1.bf16.msra.mxu0 0
  %175 = vmatprep.subr.bf16.mxu0 0
  %176 = vmatpush1.bf16.msra.mxu0 0
  %177 = vmatprep.subr.bf16.mxu0 0
  %178 = vmatpush1.bf16.msra.mxu0 0
  %179 = vmatprep.subr.bf16.mxu0 0
  %180 = vmatpush1.bf16.msra.mxu0 0
  %181 = vmatprep.subr.bf16.mxu0 0
  %182 = vmatpush1.bf16.msra.mxu0 0
  %183 = vmatprep.subr.bf16.mxu0 0
  %184 = vmatpush1.bf16.msra.mxu0 0
  %185 = vmatprep.subr.bf16.mxu0 0
  %186 = vmatpush1.bf16.msra.mxu0 0
  %187 = vmatprep.subr.bf16.mxu0 0
  %188 = vmatpush1.bf16.msra.mxu0 0
  %189 = vmatprep.subr.bf16.mxu0 0
  %190 = vmatpush1.bf16.msra.mxu0 0
  %191 = vmatprep.subr.bf16.mxu0 0
  %192 = vmatpush1.bf16.msra.mxu0 0
  %193 = vmatprep.subr.bf16.mxu0 0
  %194 = vmatpush1.bf16.msra.mxu0 0
  %195 = vmatprep.subr.bf16.mxu0 0
  %196 = vmatpush1.bf16.msra.mxu0 0
  %197 = vmatprep.subr.bf16.mxu0 0
  %198 = vmatpush1.bf16.msra.mxu0 0
  %199 = vmatprep.subr.bf16.mxu0 0
  %200 = vmatpush1.bf16.msra.mxu0 0
  %201 = vmatprep.subr.bf16.mxu0 0
  %202 = vmatpush1.bf16.msra.mxu0 0
  %203 = vmatprep.mubr.bf16.mxu0 0
  %204 = vmatmul.mubr.bf16.gmra.mrb[0].mxu0 %v100
  %v205 = vpop.f32.mrb[0].mxu0
  %v206 = vadd.f32 %v53, %v205
  %v207 = vpop.f32.mrb[0].mxu0
  %v208 = vadd.f32 %v53, %v207
  %v209 = vpop.f32.mrb[0].mxu0
  %v210 = vadd.f32 %v58, %v209
  %v211 = vpop.f32.mrb[0].mxu0
  %v212 = vadd.f32 %v58, %v211
  %213 = vmatprep.mubr.bf16.mxu0 0
  %214 = vmatmul.mubr.bf16.gmra.mrb[0].mxu0 %v103
  %v215 = vpop.f32.mrb[0].mxu0
  %v216 = vadd.f32 %v63, %v215
  %v217 = vpop.f32.mrb[0].mxu0
  %v218 = vadd.f32 %v63, %v217
  %v219 = vpop.f32.mrb[0].mxu0
  %v220 = vadd.f32 %v68, %v219
  %v221 = vpop.f32.mrb[0].mxu0
  %v222 = vadd.f32 %v68, %v221
  %223 = vdwg.mxu0
  %vm224 = vcmp.ge.f32.partialorder %v153, 0.0
  %vm225 = vcmp.ge.f32.partialorder %v155, 0.0
  %vm226 = vcmp.ge.f32.partialorder %v206, 0.0
  %vm227 = vcmp.ge.f32.partialorder %v208, 0.0
  %vm228 = vcmp.ge.f32.partialorder %v157, 0.0
  %vm229 = vcmp.ge.f32.partialorder %v159, 0.0
  %vm230 = vcmp.ge.f32.partialorder %v210, 0.0
  %vm231 = vcmp.ge.f32.partialorder %v212, 0.0
  %vm232 = vcmp.ge.f32.partialorder %v163, 0.0
  %vm233 = vcmp.ge.f32.partialorder %v165, 0.0
  %vm234 = vcmp.ge.f32.partialorder %v216, 0.0
  %vm235 = vcmp.ge.f32.partialorder %v218, 0.0
  %vm236 = vcmp.ge.f32.partialorder %v167, 0.0
  %vm237 = vcmp.ge.f32.partialorder %v169, 0.0
  %vm238 = vcmp.ge.f32.partialorder %v220, 0.0
  %vm239 = vcmp.ge.f32.partialorder %v222, 0.0
  %v240 = vmul.f32 %v153, 0.2
  %v241 = vmul.f32 %v155, 0.2
  %v242 = vmul.f32 %v206, 0.2
  %v243 = vmul.f32 %v208, 0.2
  %v244 = vmul.f32 %v157, 0.2
  %v245 = vmul.f32 %v159, 0.2
  %v246 = vmul.f32 %v210, 0.2
  %v247 = vmul.f32 %v212, 0.2
  %v248 = vmul.f32 %v163, 0.2
  %v249 = vmul.f32 %v165, 0.2
  %v250 = vmul.f32 %v216, 0.2
  %v251 = vmul.f32 %v218, 0.2
  %v252 = vmul.f32 %v167, 0.2
  %v253 = vmul.f32 %v169, 0.2
  %v254 = vmul.f32 %v220, 0.2
  %v255 = vmul.f32 %v222, 0.2
  %v256 = vsel %vm224, %v153, %v240
  %v257 = vsel %vm225, %v155, %v241
  %v258 = vsel %vm226, %v206, %v242
  %v259 = vsel %vm227, %v208, %v243
  %v260 = vsel %vm228, %v157, %v244
  %v261 = vsel %vm229, %v159, %v245
  %v262 = vsel %vm230, %v210, %v246
  %v263 = vsel %vm231, %v212, %v247
  %v264 = vsel %vm232, %v163, %v248
  %v265 = vsel %vm233, %v165, %v249
  %v266 = vsel %vm234, %v216, %v250
  %v267 = vsel %vm235, %v218, %v251
  %v268 = vsel %vm236, %v167, %v252
  %v269 = vsel %vm237, %v169, %v253
  %v270 = vsel %vm238, %v220, %v254
  %v271 = vsel %vm239, %v222, %v255
  %v272 = vld [vmem:[%s3] sm:$0xf]
  %v273 = vld [vmem:[%s3 + $0x4] sm:$0xf]
  %v274 = vld [vmem:[%s3 + $0x8] sm:$0xf]
  %v275 = vld [vmem:[%s3 + $0xc] sm:$0xf]
  %v276 = vld [vmem:[%s3 + $0x10] sm:$0xf]
  %v277 = vld [vmem:[%s3 + $0x14] sm:$0xf]
  %v278 = vld [vmem:[%s3 + $0x18] sm:$0xf]
  %v279 = vld [vmem:[%s3 + $0x1c] sm:$0xf]
  %v280 = vpack.c.bf16 %v260, %v256
  %v281 = vpack.c.bf16 %v261, %v257
  %v282 = vpack.c.bf16 %v262, %v258
  %v283 = vpack.c.bf16 %v263, %v259
  %v284 = vpack.c.bf16 %v268, %v264
  %v285 = vpack.c.bf16 %v269, %v265
  %v286 = vpack.c.bf16 %v270, %v266
  %v287 = vpack.c.bf16 %v271, %v267
  %v296 = vunpack.c.l.b16 %v272
  %v297 = vunpack.c.l.b16 %v273
  %v298 = vunpack.c.l.b16 %v274
  %v299 = vunpack.c.l.b16 %v275
  %v300 = vunpack.c.l.b16 %v276
  %v301 = vunpack.c.l.b16 %v277
  %v302 = vunpack.c.l.b16 %v278
  %v303 = vunpack.c.l.b16 %v279
  %v304 = vpack.c.b16 %v297, %v296
  %v305 = vpack.c.b16 %v299, %v298
  %v306 = vpack.c.b16 %v301, %v300
  %v307 = vpack.c.b16 %v303, %v302
  %vm308 = vcmask 261120
  %v310 = vsel %vm308, %v304, 0
  %v313 = vsel %vm308, %v305, 0
  %v316 = vsel %vm308, %v306, 0
  %v319 = vsel %vm308, %v307, 0
  %321 = vmatprep.subr.bf16.mxu0 %v281
  %322 = vmatpush1.bf16.msra.mxu0 %v280
  %323 = vmatprep.subr.bf16.mxu0 %v285
  %324 = vmatpush1.bf16.msra.mxu0 %v284
  %325 = vmatprep.subr.bf16.mxu0 0
  %326 = vmatpush1.bf16.msra.mxu0 0
  %327 = vmatprep.subr.bf16.mxu0 0
  %328 = vmatpush1.bf16.msra.mxu0 0
  %329 = vmatprep.subr.bf16.mxu0 0
  %330 = vmatpush1.bf16.msra.mxu0 0
  %331 = vmatprep.subr.bf16.mxu0 0
  %332 = vmatpush1.bf16.msra.mxu0 0
  %333 = vmatprep.subr.bf16.mxu0 0
  %334 = vmatpush1.bf16.msra.mxu0 0
  %335 = vmatprep.subr.bf16.mxu0 0
  %336 = vmatpush1.bf16.msra.mxu0 0
  %337 = vmatprep.subr.bf16.mxu0 0
  %338 = vmatpush1.bf16.msra.mxu0 0
  %339 = vmatprep.subr.bf16.mxu0 0
  %340 = vmatpush1.bf16.msra.mxu0 0
  %341 = vmatprep.subr.bf16.mxu0 0
  %342 = vmatpush1.bf16.msra.mxu0 0
  %343 = vmatprep.subr.bf16.mxu0 0
  %344 = vmatpush1.bf16.msra.mxu0 0
  %345 = vmatprep.subr.bf16.mxu0 0
  %346 = vmatpush1.bf16.msra.mxu0 0
  %347 = vmatprep.subr.bf16.mxu0 0
  %348 = vmatpush1.bf16.msra.mxu0 0
  %349 = vmatprep.subr.bf16.mxu0 0
  %350 = vmatpush1.bf16.msra.mxu0 0
  %351 = vmatprep.subr.bf16.mxu0 0
  %352 = vmatpush1.bf16.msra.mxu0 0
  %353 = vmatprep.mubr.bf16.mxu0 0
  %354 = vmatmul.mubr.bf16.gmra.mrb[0].mxu0 %v310
  %v355 = vpop.f32.mrb[0].mxu0
  %v356 = vadd.f32 0.0, %v355
  %v357 = vpop.f32.mrb[0].mxu0
  %v358 = vadd.f32 0.0, %v357
  %v359 = vpop.f32.mrb[0].mxu0
  %v360 = vadd.f32 0.0, %v359
  %v361 = vpop.f32.mrb[0].mxu0
  %v362 = vadd.f32 0.0, %v361
  %363 = vmatprep.mubr.bf16.mxu0 0
  %364 = vmatmul.mubr.bf16.gmra.mrb[0].mxu0 %v313
  %v365 = vpop.f32.mrb[0].mxu0
  %v366 = vadd.f32 0.0, %v365
  %v367 = vpop.f32.mrb[0].mxu0
  %v368 = vadd.f32 0.0, %v367
  %v369 = vpop.f32.mrb[0].mxu0
  %v370 = vadd.f32 0.0, %v369
  %v371 = vpop.f32.mrb[0].mxu0
  %v372 = vadd.f32 0.0, %v371
  %373 = vmatprep.mubr.bf16.mxu0 0
  %374 = vmatmul.mubr.bf16.gmra.mrb[0].mxu0 %v316
  %v375 = vpop.f32.mrb[0].mxu0
  %v376 = vadd.f32 0.0, %v375
  %v377 = vpop.f32.mrb[0].mxu0
  %v378 = vadd.f32 0.0, %v377
  %v379 = vpop.f32.mrb[0].mxu0
  %v380 = vadd.f32 0.0, %v379
  %v381 = vpop.f32.mrb[0].mxu0
  %v382 = vadd.f32 0.0, %v381
  %383 = vmatprep.mubr.bf16.mxu0 0
  %384 = vmatmul.mubr.bf16.gmra.mrb[0].mxu0 %v319
  %v385 = vpop.f32.mrb[0].mxu0
  %v386 = vadd.f32 0.0, %v385
  %v387 = vpop.f32.mrb[0].mxu0
  %v388 = vadd.f32 0.0, %v387
  %v389 = vpop.f32.mrb[0].mxu0
  %v390 = vadd.f32 0.0, %v389
  %v391 = vpop.f32.mrb[0].mxu0
  %v392 = vadd.f32 0.0, %v391
  %393 = vdwg.mxu0
  %394 = vmatprep.subr.bf16.mxu0 %v283
  %395 = vmatpush1.bf16.msra.mxu0 %v282
  %396 = vmatprep.subr.bf16.mxu0 %v287
  %397 = vmatpush1.bf16.msra.mxu0 %v286
  %398 = vmatprep.subr.bf16.mxu0 0
  %399 = vmatpush1.bf16.msra.mxu0 0
  %400 = vmatprep.subr.bf16.mxu0 0
  %401 = vmatpush1.bf16.msra.mxu0 0
  %402 = vmatprep.subr.bf16.mxu0 0
  %403 = vmatpush1.bf16.msra.mxu0 0
  %404 = vmatprep.subr.bf16.mxu0 0
  %405 = vmatpush1.bf16.msra.mxu0 0
  %406 = vmatprep.subr.bf16.mxu0 0
  %407 = vmatpush1.bf16.msra.mxu0 0
  %408 = vmatprep.subr.bf16.mxu0 0
  %409 = vmatpush1.bf16.msra.mxu0 0
  %410 = vmatprep.subr.bf16.mxu0 0
  %411 = vmatpush1.bf16.msra.mxu0 0
  %412 = vmatprep.subr.bf16.mxu0 0
  %413 = vmatpush1.bf16.msra.mxu0 0
  %414 = vmatprep.subr.bf16.mxu0 0
  %415 = vmatpush1.bf16.msra.mxu0 0
  %416 = vmatprep.subr.bf16.mxu0 0
  %417 = vmatpush1.bf16.msra.mxu0 0
  %418 = vmatprep.subr.bf16.mxu0 0
  %419 = vmatpush1.bf16.msra.mxu0 0
  %420 = vmatprep.subr.bf16.mxu0 0
  %421 = vmatpush1.bf16.msra.mxu0 0
  %422 = vmatprep.subr.bf16.mxu0 0
  %423 = vmatpush1.bf16.msra.mxu0 0
  %424 = vmatprep.subr.bf16.mxu0 0
  %425 = vmatpush1.bf16.msra.mxu0 0
  %426 = vmatprep.mubr.bf16.mxu0 0
  %427 = vmatmul.mubr.bf16.gmra.mrb[0].mxu0 %v310
  %v428 = vpop.f32.mrb[0].mxu0
  %v429 = vadd.f32 0.0, %v428
  %v430 = vpop.f32.mrb[0].mxu0
  %v431 = vadd.f32 0.0, %v430
  %v432 = vpop.f32.mrb[0].mxu0
  %v433 = vadd.f32 0.0, %v432
  %v434 = vpop.f32.mrb[0].mxu0
  %v435 = vadd.f32 0.0, %v434
  %436 = vmatprep.mubr.bf16.mxu0 0
  %437 = vmatmul.mubr.bf16.gmra.mrb[0].mxu0 %v313
  %v438 = vpop.f32.mrb[0].mxu0
  %v439 = vadd.f32 0.0, %v438
  %v440 = vpop.f32.mrb[0].mxu0
  %v441 = vadd.f32 0.0, %v440
  %v442 = vpop.f32.mrb[0].mxu0
  %v443 = vadd.f32 0.0, %v442
  %v444 = vpop.f32.mrb[0].mxu0
  %v445 = vadd.f32 0.0, %v444
  %446 = vmatprep.mubr.bf16.mxu0 0
  %447 = vmatmul.mubr.bf16.gmra.mrb[0].mxu0 %v316
  %v448 = vpop.f32.mrb[0].mxu0
  %v449 = vadd.f32 0.0, %v448
  %v450 = vpop.f32.mrb[0].mxu0
  %v451 = vadd.f32 0.0, %v450
  %v452 = vpop.f32.mrb[0].mxu0
  %v453 = vadd.f32 0.0, %v452
  %v454 = vpop.f32.mrb[0].mxu0
  %v455 = vadd.f32 0.0, %v454
  %456 = vmatprep.mubr.bf16.mxu0 0
  %457 = vmatmul.mubr.bf16.gmra.mrb[0].mxu0 %v319
  %v458 = vpop.f32.mrb[0].mxu0
  %v459 = vadd.f32 0.0, %v458
  %v460 = vpop.f32.mrb[0].mxu0
  %v461 = vadd.f32 0.0, %v460
  %v462 = vpop.f32.mrb[0].mxu0
  %v463 = vadd.f32 0.0, %v462
  %v464 = vpop.f32.mrb[0].mxu0
  %v465 = vadd.f32 0.0, %v464
  %466 = vdwg.mxu0
  %v467 = vld [vmem:[%s4] sm:$0xff]
  %v468 = vld [vmem:[%s4 + $0x8] sm:$0xff]
  %v469 = vld [vmem:[%s4 + $0x10] sm:$0xff]
  %v470 = vld [vmem:[%s4 + $0x18] sm:$0xff]
  %v471 = vld [vmem:[%s4 + $0x20] sm:$0xff]
  %v472 = vld [vmem:[%s4 + $0x28] sm:$0xff]
  %v473 = vld [vmem:[%s4 + $0x30] sm:$0xff]
  %v474 = vld [vmem:[%s4 + $0x38] sm:$0xff]
  %v475 = vadd.f32 %v356, %v358
  %v476 = vadd.f32 %v475, %v429
  %v477 = vadd.f32 %v476, %v431
  %478 = vadd.xlane.f32.xlu0 %v477
  %v479 = vpop.xlane.xlu0 %478
  %v480 = vadd.f32 %v360, %v362
  %v481 = vadd.f32 %v480, %v433
  %v482 = vadd.f32 %v481, %v435
  %483 = vadd.xlane.f32.xlu0 %v482
  %v484 = vpop.xlane.xlu0 %483
  %v485 = vadd.f32 %v366, %v368
  %v486 = vadd.f32 %v485, %v439
  %v487 = vadd.f32 %v486, %v441
  %488 = vadd.xlane.f32.xlu0 %v487
  %v489 = vpop.xlane.xlu0 %488
  %v490 = vadd.f32 %v370, %v372
  %v491 = vadd.f32 %v490, %v443
  %v492 = vadd.f32 %v491, %v445
  %493 = vadd.xlane.f32.xlu0 %v492
  %v494 = vpop.xlane.xlu0 %493
  %v495 = vadd.f32 %v376, %v378
  %v496 = vadd.f32 %v495, %v449
  %v497 = vadd.f32 %v496, %v451
  %498 = vadd.xlane.f32.xlu0 %v497
  %v499 = vpop.xlane.xlu0 %498
  %v500 = vadd.f32 %v380, %v382
  %v501 = vadd.f32 %v500, %v453
  %v502 = vadd.f32 %v501, %v455
  %503 = vadd.xlane.f32.xlu0 %v502
  %v504 = vpop.xlane.xlu0 %503
  %v505 = vadd.f32 %v386, %v388
  %v506 = vadd.f32 %v505, %v459
  %v507 = vadd.f32 %v506, %v461
  %508 = vadd.xlane.f32.xlu0 %v507
  %v509 = vpop.xlane.xlu0 %508
  %v510 = vadd.f32 %v390, %v392
  %v511 = vadd.f32 %v510, %v463
  %v512 = vadd.f32 %v511, %v465
  %513 = vadd.xlane.f32.xlu0 %v512
  %v514 = vpop.xlane.xlu0 %513
  %v515 = vadd.f32 %v467, %v479
  %v516 = vadd.f32 %v468, %v484
  %v517 = vadd.f32 %v469, %v489
  %v518 = vadd.f32 %v470, %v494
  %v519 = vadd.f32 %v471, %v499
  %v520 = vadd.f32 %v472, %v504
  %v521 = vadd.f32 %v473, %v509
  %v522 = vadd.f32 %v474, %v514
  %vm523 = vcmask 7168
  %524 = vst.msk [vmem:[%s4] sm:$0xff] %vm523, %v515
  %525 = vst.msk [vmem:[%s4 + $0x8] sm:$0xff] %vm523, %v516
  %526 = vst.msk [vmem:[%s4 + $0x10] sm:$0xff] %vm523, %v517
  %527 = vst.msk [vmem:[%s4 + $0x18] sm:$0xff] %vm523, %v518
  %528 = vst.msk [vmem:[%s4 + $0x20] sm:$0xff] %vm523, %v519
  %529 = vst.msk [vmem:[%s4 + $0x28] sm:$0xff] %vm523, %v520
  %530 = vst.msk [vmem:[%s4 + $0x30] sm:$0xff] %vm523, %v521
  %531 = vst.msk [vmem:[%s4 + $0x38] sm:$0xff] %vm523, %v522
  %v532 = vld [vmem:[%s5] sm:$0xff]
  %v533 = vld [vmem:[%s5 + $0x8] sm:$0xff]
  %v534 = vld [vmem:[%s5 + $0x10] sm:$0xff]
  %v535 = vld [vmem:[%s5 + $0x18] sm:$0xff]
  %v536 = vld [vmem:[%s5 + $0x20] sm:$0xff]
  %v537 = vld [vmem:[%s5 + $0x28] sm:$0xff]
  %v538 = vld [vmem:[%s5 + $0x30] sm:$0xff]
  %v539 = vld [vmem:[%s5 + $0x38] sm:$0xff]
  %v540 = vmul.f32 %v356, %v356
  %v541 = vmul.f32 %v358, %v358
  %v542 = vmul.f32 %v429, %v429
  %v543 = vmul.f32 %v431, %v431
  %v544 = vmul.f32 %v360, %v360
  %v545 = vmul.f32 %v362, %v362
  %v546 = vmul.f32 %v433, %v433
  %v547 = vmul.f32 %v435, %v435
  %v548 = vmul.f32 %v366, %v366
  %v549 = vmul.f32 %v368, %v368
  %v550 = vmul.f32 %v439, %v439
  %v551 = vmul.f32 %v441, %v441
  %v552 = vmul.f32 %v370, %v370
  %v553 = vmul.f32 %v372, %v372
  %v554 = vmul.f32 %v443, %v443
  %v555 = vmul.f32 %v445, %v445
  %v556 = vmul.f32 %v376, %v376
  %v557 = vmul.f32 %v378, %v378
  %v558 = vmul.f32 %v449, %v449
  %v559 = vmul.f32 %v451, %v451
  %v560 = vmul.f32 %v380, %v380
  %v561 = vmul.f32 %v382, %v382
  %v562 = vmul.f32 %v453, %v453
  %v563 = vmul.f32 %v455, %v455
  %v564 = vmul.f32 %v386, %v386
  %v565 = vmul.f32 %v388, %v388
  %v566 = vmul.f32 %v459, %v459
  %v567 = vmul.f32 %v461, %v461
  %v568 = vmul.f32 %v390, %v390
  %v569 = vmul.f32 %v392, %v392
  %v570 = vmul.f32 %v463, %v463
  %v571 = vmul.f32 %v465, %v465
  %v572 = vadd.f32 %v540, %v541
  %v573 = vadd.f32 %v572, %v542
  %v574 = vadd.f32 %v573, %v543
  %575 = vadd.xlane.f32.xlu0 %v574
  %v576 = vpop.xlane.xlu0 %575
  %v577 = vadd.f32 %v544, %v545
  %v578 = vadd.f32 %v577, %v546
  %v579 = vadd.f32 %v578, %v547
  %580 = vadd.xlane.f32.xlu0 %v579
  %v581 = vpop.xlane.xlu0 %580
  %v582 = vadd.f32 %v548, %v549
  %v583 = vadd.f32 %v582, %v550
  %v584 = vadd.f32 %v583, %v551
  %585 = vadd.xlane.f32.xlu0 %v584
  %v586 = vpop.xlane.xlu0 %585
  %v587 = vadd.f32 %v552, %v553
  %v588 = vadd.f32 %v587, %v554
  %v589 = vadd.f32 %v588, %v555
  %590 = vadd.xlane.f32.xlu0 %v589
  %v591 = vpop.xlane.xlu0 %590
  %v592 = vadd.f32 %v556, %v557
  %v593 = vadd.f32 %v592, %v558
  %v594 = vadd.f32 %v593, %v559
  %595 = vadd.xlane.f32.xlu0 %v594
  %v596 = vpop.xlane.xlu0 %595
  %v597 = vadd.f32 %v560, %v561
  %v598 = vadd.f32 %v597, %v562
  %v599 = vadd.f32 %v598, %v563
  %600 = vadd.xlane.f32.xlu0 %v599
  %v601 = vpop.xlane.xlu0 %600
  %v602 = vadd.f32 %v564, %v565
  %v603 = vadd.f32 %v602, %v566
  %v604 = vadd.f32 %v603, %v567
  %605 = vadd.xlane.f32.xlu0 %v604
  %v606 = vpop.xlane.xlu0 %605
  %v607 = vadd.f32 %v568, %v569
  %v608 = vadd.f32 %v607, %v570
  %v609 = vadd.f32 %v608, %v571
  %610 = vadd.xlane.f32.xlu0 %v609
  %v611 = vpop.xlane.xlu0 %610
  %v612 = vadd.f32 %v532, %v576
  %v613 = vadd.f32 %v533, %v581
  %v614 = vadd.f32 %v534, %v586
  %v615 = vadd.f32 %v535, %v591
  %v616 = vadd.f32 %v536, %v596
  %v617 = vadd.f32 %v537, %v601
  %v618 = vadd.f32 %v538, %v606
  %v619 = vadd.f32 %v539, %v611
  %620 = vst.msk [vmem:[%s5] sm:$0xff] %vm523, %v612
  %621 = vst.msk [vmem:[%s5 + $0x8] sm:$0xff] %vm523, %v613
  %622 = vst.msk [vmem:[%s5 + $0x10] sm:$0xff] %vm523, %v614
  %623 = vst.msk [vmem:[%s5 + $0x18] sm:$0xff] %vm523, %v615
  %624 = vst.msk [vmem:[%s5 + $0x20] sm:$0xff] %vm523, %v616
  %625 = vst.msk [vmem:[%s5 + $0x28] sm:$0xff] %vm523, %v617
  %626 = vst.msk [vmem:[%s5 + $0x30] sm:$0xff] %vm523, %v618
  %627 = vst.msk [vmem:[%s5 + $0x38] sm:$0xff] %vm523, %v619
  // Predicated region
  $region22: #{pixel_discriminator_forward.2} parent=0 // pred_check
    _
  $region23: #{pixel_discriminator_forward.2} parent=0 // pred_check_branch
    %629 = sbr.rel (0) target = $region25
  $region24: #{pixel_discriminator_forward.2} parent=0 // pred_region
    _
  $region25: #{pixel_discriminator_forward.2} parent=0 // pred_fallthru
    _
  // Predicated region
  $region26: #{pixel_discriminator_forward.2} parent=0 // pred_check
    _
  $region27: #{pixel_discriminator_forward.2} parent=0 // pred_check_branch
    %631 = sbr.rel (0) target = $region29
  $region28: #{pixel_discriminator_forward.2} parent=0 // pred_region
    _
  $region29: #{pixel_discriminator_forward.2} parent=0 // pred_fallthru
    _
  // Predicated region
  $region30: #{pixel_discriminator_forward.2} parent=0 // pred_check
    _
  $region31: #{pixel_discriminator_forward.2} parent=0 // pred_check_branch
    %633 = sbr.rel (0) target = $region33
  $region32: #{pixel_discriminator_forward.2} parent=0 // pred_region
    _
  $region33: #{pixel_discriminator_forward.2} parent=0 // pred_fallthru
    _
  // Predicated region
  $region34: #{pixel_discriminator_forward.2} parent=0 // pred_check
    _
  $region35: #{pixel_discriminator_forward.2} parent=0 // pred_check_branch
    %635 = sbr.rel (0) target = $region37
  $region36: #{pixel_discriminator_forward.2} parent=0 // pred_region
    _
  $region37: #{pixel_discriminator_forward.2} parent=0 // pred_fallthru
    _

// kernel: pixel_discriminator_forward.3
$region0: #{pixel_discriminator_forward.3}
  #allocation0 [shape = 'u32[]', space=smem, size = 0x4, offset = 0x4, fixed_abs, tag = 'smem constant byte address 0x4 - core index']
  #allocation1 [shape = 'u32[144,128]{1,0:T(1,128)}', space=vmem, size = 0x12000, scoped, tag = 'internal scratch']
  %s0 = inlined_call_operand.vmem [shape: bf16[4,512], index: 0, kind: input, shape index: {}]
  %s1 = inlined_call_operand.vmem [shape: bf16[32,4], index: 1, kind: input, shape index: {}]
  %s2 = inlined_call_operand.vmem [shape: f32[32,1], index: 2, kind: input, shape index: {}]
  %s3 = inlined_call_operand.vmem [shape: bf16[64,32], index: 3, kind: input, shape index: {}]
  %s4 = inlined_call_operand.vmem [shape: f32[64,1], index: 4, kind: input, shape index: {}]
  %s5 = inlined_call_operand.vmem [shape: bf16[1,64], index: 5, kind: input, shape index: {}]
  %s6 = inlined_call_operand.vmem [shape: f32[1,512], index: 6, kind: output, shape index: {}]
  %s7 = sld [smem:[#allocation0]]
  $region34: #{pixel_discriminator_forward.3} parent=0
    _
  %s9 = ssub.s32 1, %s7
  %s10 = scalar_select 0, %s9, %s7
  // Predicated region
  $region2: #{pixel_discriminator_forward.3} parent=0 // pred_check
    _
  $region3: #{pixel_discriminator_forward.3} parent=0 // pred_check_branch
    %12 = sbr.rel (0) target = $region5
  $region4: #{pixel_discriminator_forward.3} parent=0 // pred_region
    _
  $region5: #{pixel_discriminator_forward.3} parent=0 // pred_fallthru
    _
  // Predicated region
  $region6: #{pixel_discriminator_forward.3} parent=0 // pred_check
    _
  $region7: #{pixel_discriminator_forward.3} parent=0 // pred_check_branch
    %14 = sbr.rel (0) target = $region9
  $region8: #{pixel_discriminator_forward.3} parent=0 // pred_region
    _
  $region9: #{pixel_discriminator_forward.3} parent=0 // pred_fallthru
    _
  // Predicated region
  $region10: #{pixel_discriminator_forward.3} parent=0 // pred_check
    _
  $region11: #{pixel_discriminator_forward.3} parent=0 // pred_check_branch
    %16 = sbr.rel (0) target = $region13
  $region12: #{pixel_discriminator_forward.3} parent=0 // pred_region
    _
  $region13: #{pixel_discriminator_forward.3} parent=0 // pred_fallthru
    _
  // Predicated region
  $region14: #{pixel_discriminator_forward.3} parent=0 // pred_check
    _
  $region15: #{pixel_discriminator_forward.3} parent=0 // pred_check_branch
    %18 = sbr.rel (0) target = $region17
  $region16: #{pixel_discriminator_forward.3} parent=0 // pred_region
    _
  $region17: #{pixel_discriminator_forward.3} parent=0 // pred_fallthru
    _
  // Predicated region
  $region18: #{pixel_discriminator_forward.3} parent=0 // pred_check
    _
  $region19: #{pixel_discriminator_forward.3} parent=0 // pred_check_branch
    %20 = sbr.rel (0) target = $region21
  $region20: #{pixel_discriminator_forward.3} parent=0 // pred_region
    _
  $region21: #{pixel_discriminator_forward.3} parent=0 // pred_fallthru
    _
  // Predicated region
  $region22: #{pixel_discriminator_forward.3} parent=0 // pred_check
    _
  $region23: #{pixel_discriminator_forward.3} parent=0 // pred_check_branch
    %22 = sbr.rel (0) target = $region25
  $region24: #{pixel_discriminator_forward.3} parent=0 // pred_region
    _
  $region25: #{pixel_discriminator_forward.3} parent=0 // pred_fallthru
    _
  %v24 = vld [vmem:[%s1] sm:$0xf]
  %v25 = vld [vmem:[%s1 + $0x4] sm:$0xf]
  %v26 = vld [vmem:[%s1 + $0x8] sm:$0xf]
  %v27 = vld [vmem:[%s1 + $0xc] sm:$0xf]
  %v28 = vld [vmem:[%s0] sm:$0xff]
  %v29 = vld [vmem:[%s2] sm:$0xff]
  %v30 = vld [vmem:[%s2 + $0x8] sm:$0xff]
  %v31 = vld [vmem:[%s2 + $0x10] sm:$0xff]
  %v32 = vld [vmem:[%s2 + $0x18] sm:$0xff]
  %34 = vset.pattern.permute.xlu0 0
  %35 = vperm.xlu0 %34, %v29
  %v36 = vpop.permute.xlu0 %35
  %39 = vset.pattern.permute.xlu0 0
  %40 = vperm.xlu0 %39, %v30
  %v41 = vpop.permute.xlu0 %40
  %44 = vset.pattern.permute.xlu0 0
  %45 = vperm.xlu0 %44, %v31
  %v46 = vpop.permute.xlu0 %45
  %49 = vset.pattern.permute.xlu0 0
  %50 = vperm.xlu0 %49, %v32
  %v51 = vpop.permute.xlu0 %50
  %v57 = vunpack.c.l.b16 %v24
  %v58 = vunpack.c.l.b16 %v25
  %v59 = vunpack.c.l.b16 %v26
  %v60 = vunpack.c.l.b16 %v27
  %v61 = vpack.c.b16 %v58, %v57
  %v62 = vpack.c.b16 %v60, %v59
  %v64 = vcombine.high %v28, %v28
  %v66 = vunpack.c.l.s4 1983009808
  %v67 = vunpack.c.0.s8 %v66
  %v68 = vlaneseq
  %v69 = vshrl.u32 %v68, 7
  %v70 = vsub.s32 %v67, %v69
  %v71 = vrot.slane %v28, %v70
  %v73 = vunpack.c.l.s4 1983009808
  %v74 = vunpack.c.0.s8 %v73
  %v75 = vlaneseq
  %v76 = vshrl.u32 %v75, 7
  %v77 = vsub.s32 %v74, %v76
  %v78 = vrot.slane %v64, %v77
  %v79 = vcombine.high %v71, %v71
  %v80 = vcombine.high %v78, %v78
  %vm81 = vcmask 31744
  %v83 = vsel %vm81, %v61, 0
  %v86 = vsel %vm81, %v62, 0
  %vm88 = vcmask 1041408
  %v90 = vsel %vm88, %v71, 0
  %v93 = vsel %vm88, %v79, 0
  %v96 = vsel %vm88, %v78, 0
  %v99 = vsel %vm88, %v80, 0
  %101 = vmatprep.subr.bf16.mxu0 %v93
  %102 = vmatpush1.bf16.msra.mxu0 %v90
  %103 = vmatprep.subr.bf16.mxu0 0
  %104 = vmatpush1.bf16.msra.mxu0 0
  %105 = vmatprep.subr.bf16.mxu0 0
  %106 = vmatpush1.bf16.msra.mxu0 0
  %107 = vmatprep.subr.bf16.mxu0 0
  %108 = vmatpush1.bf16.msra.mxu0 0
  %109 = vmatprep.subr.bf16.mxu0 0
  %110 = vmatpush1.bf16.msra.mxu0 0
  %111 = vmatprep.subr.bf16.mxu0 0
  %112 = vmatpush1.bf16.msra.mxu0 0
  %113 = vmatprep.subr.bf16.mxu0 0
  %114 = vmatpush1.bf16.msra.mxu0 0
  %115 = vmatprep.subr.bf16.mxu0 0
  %116 = vmatpush1.bf16.msra.mxu0 0
  %117 = vmatprep.subr.bf16.mxu0 0
  %118 = vmatpush1.bf16.msra.mxu0 0
  %119 = vmatprep.subr.bf16.mxu0 0
  %120 = vmatpush1.bf16.msra.mxu0 0
  %121 = vmatprep.subr.bf16.mxu0 0
  %122 = vmatpush1.bf16.msra.mxu0 0
  %123 = vmatprep.subr.bf16.mxu0 0
  %124 = vmatpush1.bf16.msra.mxu0 0
  %125 = vmatprep.subr.bf16.mxu0 0
  %126 = vmatpush1.bf16.msra.mxu0 0
  %127 = vmatprep.subr.bf16.mxu0 0
  %128 = vmatpush1.bf16.msra.mxu0 0
  %129 = vmatprep.subr.bf16.mxu0 0
  %130 = vmatpush1.bf16.msra.mxu0 0
  %131 = vmatprep.subr.bf16.mxu0 0
  %132 = vmatpush1.bf16.msra.mxu0 0
  %133 = vmatprep.mubr.bf16.mxu0 0
  %134 = vmatmul.mubr.bf16.gmra.mrb[0].mxu0 %v83
  %v135 = vpop.f32.mrb[0].mxu0
  %v136 = vadd.f32 %v36, %v135
  %v137 = vpop.f32.mrb[0].mxu0
  %v138 = vadd.f32 %v36, %v137
  %v139 = vpop.f32.mrb[0].mxu0
  %v140 = vadd.f32 %v41, %v139
  %v141 = vpop.f32.mrb[0].mxu0
  %v142 = vadd.f32 %v41, %v141
  %143 = vmatprep.mubr.bf16.mxu0 0
  %144 = vmatmul.mubr.bf16.gmra.mrb[0].mxu0 %v86
  %v145 = vpop.f32.mrb[0].mxu0
  %v146 = vadd.f32 %v46, %v145
  %v147 = vpop.f32.mrb[0].mxu0
  %v148 = vadd.f32 %v46, %v147
  %v149 = vpop.f32.mrb[0].mxu0
  %v150 = vadd.f32 %v51, %v149
  %v151 = vpop.f32.mrb[0].mxu0
  %v152 = vadd.f32 %v51, %v151
  %153 = vdwg.mxu0
  %154 = vmatprep.subr.bf16.mxu0 %v99
  %155 = vmatpush1.bf16.msra.mxu0 %v96
  %156 = vmatprep.subr.bf16.mxu0 0
  %157 = vmatpush1.bf16.msra.mxu0 0
  %158 = vmatprep.subr.bf16.mxu0 0
  %159 = vmatpush1.bf16.msra.mxu0 0
  %160 = vmatprep.subr.bf16.mxu0 0
  %161 = vmatpush1.bf16.msra.mxu0 0
  %162 = vmatprep.subr.bf16.mxu0 0
  %163 = vmatpush1.bf16.msra.mxu0 0
  %164 = vmatprep.subr.bf16.mxu0 0
  %165 = vmatpush1.bf16.msra.mxu0 0
  %166 = vmatprep.subr.bf16.mxu0 0
  %167 = vmatpush1.bf16.msra.mxu0 0
  %168 = vmatprep.subr.bf16.mxu0 0
  %169 = vmatpush1.bf16.msra.mxu0 0
  %170 = vmatprep.subr.bf16.mxu0 0
  %171 = vmatpush1.bf16.msra.mxu0 0
  %172 = vmatprep.subr.bf16.mxu0 0
  %173 = vmatpush1.bf16.msra.mxu0 0
  %174 = vmatprep.subr.bf16.mxu0 0
  %175 = vmatpush1.bf16.msra.mxu0 0
  %176 = vmatprep.subr.bf16.mxu0 0
  %177 = vmatpush1.bf16.msra.mxu0 0
  %178 = vmatprep.subr.bf16.mxu0 0
  %179 = vmatpush1.bf16.msra.mxu0 0
  %180 = vmatprep.subr.bf16.mxu0 0
  %181 = vmatpush1.bf16.msra.mxu0 0
  %182 = vmatprep.subr.bf16.mxu0 0
  %183 = vmatpush1.bf16.msra.mxu0 0
  %184 = vmatprep.subr.bf16.mxu0 0
  %185 = vmatpush1.bf16.msra.mxu0 0
  %186 = vmatprep.mubr.bf16.mxu0 0
  %187 = vmatmul.mubr.bf16.gmra.mrb[0].mxu0 %v83
  %v188 = vpop.f32.mrb[0].mxu0
  %v189 = vadd.f32 %v36, %v188
  %v190 = vpop.f32.mrb[0].mxu0
  %v191 = vadd.f32 %v36, %v190
  %v192 = vpop.f32.mrb[0].mxu0
  %v193 = vadd.f32 %v41, %v192
  %v194 = vpop.f32.mrb[0].mxu0
  %v195 = vadd.f32 %v41, %v194
  %196 = vmatprep.mubr.bf16.mxu0 0
  %197 = vmatmul.mubr.bf16.gmra.mrb[0].mxu0 %v86
  %v198 = vpop.f32.mrb[0].mxu0
  %v199 = vadd.f32 %v46, %v198
  %v200 = vpop.f32.mrb[0].mxu0
  %v201 = vadd.f32 %v46, %v200
  %v202 = vpop.f32.mrb[0].mxu0
  %v203 = vadd.f32 %v51, %v202
  %v204 = vpop.f32.mrb[0].mxu0
  %v205 = vadd.f32 %v51, %v204
  %206 = vdwg.mxu0
  %vm207 = vcmp.ge.f32.partialorder %v136, 0.0
  %vm208 = vcmp.ge.f32.partialorder %v138, 0.0
  %vm209 = vcmp.ge.f32.partialorder %v189, 0.0
  %vm210 = vcmp.ge.f32.partialorder %v191, 0.0
  %vm211 = vcmp.ge.f32.partialorder %v140, 0.0
  %vm212 = vcmp.ge.f32.partialorder %v142, 0.0
  %vm213 = vcmp.ge.f32.partialorder %v193, 0.0
  %vm214 = vcmp.ge.f32.partialorder %v195, 0.0
  %vm215 = vcmp.ge.f32.partialorder %v146, 0.0
  %vm216 = vcmp.ge.f32.partialorder %v148, 0.0
  %vm217 = vcmp.ge.f32.partialorder %v199, 0.0
  %vm218 = vcmp.ge.f32.partialorder %v201, 0.0
  %vm219 = vcmp.ge.f32.partialorder %v150, 0.0
  %vm220 = vcmp.ge.f32.partialorder %v152, 0.0
  %vm221 = vcmp.ge.f32.partialorder %v203, 0.0
  %vm222 = vcmp.ge.f32.partialorder %v205, 0.0
  %v223 = vmul.f32 %v136, 0.2
  %v224 = vmul.f32 %v138, 0.2
  %v225 = vmul.f32 %v189, 0.2
  %v226 = vmul.f32 %v191, 0.2
  %v227 = vmul.f32 %v140, 0.2
  %v228 = vmul.f32 %v142, 0.2
  %v229 = vmul.f32 %v193, 0.2
  %v230 = vmul.f32 %v195, 0.2
  %v231 = vmul.f32 %v146, 0.2
  %v232 = vmul.f32 %v148, 0.2
  %v233 = vmul.f32 %v199, 0.2
  %v234 = vmul.f32 %v201, 0.2
  %v235 = vmul.f32 %v150, 0.2
  %v236 = vmul.f32 %v152, 0.2
  %v237 = vmul.f32 %v203, 0.2
  %v238 = vmul.f32 %v205, 0.2
  %v239 = vsel %vm207, %v136, %v223
  %v240 = vsel %vm208, %v138, %v224
  %v241 = vsel %vm209, %v189, %v225
  %v242 = vsel %vm210, %v191, %v226
  %v243 = vsel %vm211, %v140, %v227
  %v244 = vsel %vm212, %v142, %v228
  %v245 = vsel %vm213, %v193, %v229
  %v246 = vsel %vm214, %v195, %v230
  %v247 = vsel %vm215, %v146, %v231
  %v248 = vsel %vm216, %v148, %v232
  %v249 = vsel %vm217, %v199, %v233
  %v250 = vsel %vm218, %v201, %v234
  %v251 = vsel %vm219, %v150, %v235
  %v252 = vsel %vm220, %v152, %v236
  %v253 = vsel %vm221, %v203, %v237
  %v254 = vsel %vm222, %v205, %v238
  %v255 = vld [vmem:[%s3] sm:$0xf]
  %v256 = vld [vmem:[%s3 + $0x4] sm:$0xf]
  %v257 = vld [vmem:[%s3 + $0x8] sm:$0xf]
  %v258 = vld [vmem:[%s3 + $0xc] sm:$0xf]
  %v259 = vld [vmem:[%s3 + $0x10] sm:$0xf]
  %v260 = vld [vmem:[%s3 + $0x14] sm:$0xf]
  %v261 = vld [vmem:[%s3 + $0x18] sm:$0xf]
  %v262 = vld [vmem:[%s3 + $0x1c] sm:$0xf]
  %v263 = vpack.c.bf16 %v243, %v239
  %v264 = vpack.c.bf16 %v244, %v240
  %v265 = vpack.c.bf16 %v245, %v241
  %v266 = vpack.c.bf16 %v246, %v242
  %v267 = vpack.c.bf16 %v251, %v247
  %v268 = vpack.c.bf16 %v252, %v248
  %v269 = vpack.c.bf16 %v253, %v249
  %v270 = vpack.c.bf16 %v254, %v250
  %v271 = vld [vmem:[%s4] sm:$0xff]
  %v272 = vld [vmem:[%s4 + $0x8] sm:$0xff]
  %v273 = vld [vmem:[%s4 + $0x10] sm:$0xff]
  %v274 = vld [vmem:[%s4 + $0x18] sm:$0xff]
  %v275 = vld [vmem:[%s4 + $0x20] sm:$0xff]
  %v276 = vld [vmem:[%s4 + $0x28] sm:$0xff]
  %v277 = vld [vmem:[%s4 + $0x30] sm:$0xff]
  %v278 = vld [vmem:[%s4 + $0x38] sm:$0xff]
  %280 = vset.pattern.permute.xlu0 0
  %281 = vperm.xlu0 %280, %v271
  %v282 = vpop.permute.xlu0 %281
  %285 = vset.pattern.permute.xlu0 0
  %286 = vperm.xlu0 %285, %v272
  %v287 = vpop.permute.xlu0 %286
  %290 = vset.pattern.permute.xlu0 0
  %291 = vperm.xlu0 %290, %v273
  %v292 = vpop.permute.xlu0 %291
  %295 = vset.pattern.permute.xlu0 0
  %296 = vperm.xlu0 %295, %v274
  %v297 = vpop.permute.xlu0 %296
  %300 = vset.pattern.permute.xlu0 0
  %301 = vperm.xlu0 %300, %v275
  %v302 = vpop.permute.xlu0 %301
  %305 = vset.pattern.permute.xlu0 0
  %306 = vperm.xlu0 %305, %v276
  %v307 = vpop.permute.xlu0 %306
  %310 = vset.pattern.permute.xlu0 0
  %311 = vperm.xlu0 %310, %v277
  %v312 = vpop.permute.xlu0 %311
  %315 = vset.pattern.permute.xlu0 0
  %316 = vperm.xlu0 %315, %v278
  %v317 = vpop.permute.xlu0 %316
  %v327 = vunpack.c.l.b16 %v255
  %v328 = vunpack.c.l.b16 %v256
  %v329 = vunpack.c.l.b16 %v257
  %v330 = vunpack.c.l.b16 %v258
  %v331 = vunpack.c.l.b16 %v259
  %v332 = vunpack.c.l.b16 %v260
  %v333 = vunpack.c.l.b16 %v261
  %v334 = vunpack.c.l.b16 %v262
  %v335 = vpack.c.b16 %v328, %v327
  %v336 = vpack.c.b16 %v330, %v329
  %v337 = vpack.c.b16 %v332, %v331
  %v338 = vpack.c.b16 %v334, %v333
  %vm339 = vcmask 261120
  %v341 = vsel %vm339, %v335, 0
  %v344 = vsel %vm339, %v336, 0
  %v347 = vsel %vm339, %v337, 0
  %v350 = vsel %vm339, %v338, 0
  %352 = vmatprep.subr.bf16.mxu0 %v264
  %353 = vmatpush1.bf16.msra.mxu0 %v263
  %354 = vmatprep.subr.bf16.mxu0 %v268
  %355 = vmatpush1.bf16.msra.mxu0 %v267
  %356 = vmatprep.subr.bf16.mxu0 0
  %357 = vmatpush1.bf16.msra.mxu0 0
  %358 = vmatprep.subr.bf16.mxu0 0
  %359 = vmatpush1.bf16.msra.mxu0 0
  %360 = vmatprep.subr.bf16.mxu0 0
  %361 = vmatpush1.bf16.msra.mxu0 0
  %362 = vmatprep.subr.bf16.mxu0 0
  %363 = vmatpush1.bf16.msra.mxu0 0
  %364 = vmatprep.subr.bf16.mxu0 0
  %365 = vmatpush1.bf16.msra.mxu0 0
  %366 = vmatprep.subr.bf16.mxu0 0
  %367 = vmatpush1.bf16.msra.mxu0 0
  %368 = vmatprep.subr.bf16.mxu0 0
  %369 = vmatpush1.bf16.msra.mxu0 0
  %370 = vmatprep.subr.bf16.mxu0 0
  %371 = vmatpush1.bf16.msra.mxu0 0
  %372 = vmatprep.subr.bf16.mxu0 0
  %373 = vmatpush1.bf16.msra.mxu0 0
  %374 = vmatprep.subr.bf16.mxu0 0
  %375 = vmatpush1.bf16.msra.mxu0 0
  %376 = vmatprep.subr.bf16.mxu0 0
  %377 = vmatpush1.bf16.msra.mxu0 0
  %378 = vmatprep.subr.bf16.mxu0 0
  %379 = vmatpush1.bf16.msra.mxu0 0
  %380 = vmatprep.subr.bf16.mxu0 0
  %381 = vmatpush1.bf16.msra.mxu0 0
  %382 = vmatprep.subr.bf16.mxu0 0
  %383 = vmatpush1.bf16.msra.mxu0 0
  %384 = vmatprep.mubr.bf16.mxu0 0
  %385 = vmatmul.mubr.bf16.gmra.mrb[0].mxu0 %v341
  %v386 = vpop.f32.mrb[0].mxu0
  %v387 = vadd.f32 %v282, %v386
  %v388 = vpop.f32.mrb[0].mxu0
  %v389 = vadd.f32 %v282, %v388
  %v390 = vpop.f32.mrb[0].mxu0
  %v391 = vadd.f32 %v287, %v390
  %v392 = vpop.f32.mrb[0].mxu0
  %v393 = vadd.f32 %v287, %v392
  %394 = vmatprep.mubr.bf16.mxu0 0
  %395 = vmatmul.mubr.bf16.gmra.mrb[0].mxu0 %v344
  %v396 = vpop.f32.mrb[0].mxu0
  %v397 = vadd.f32 %v292, %v396
  %v398 = vpop.f32.mrb[0].mxu0
  %v399 = vadd.f32 %v292, %v398
  %v400 = vpop.f32.mrb[0].mxu0
  %v401 = vadd.f32 %v297, %v400
  %v402 = vpop.f32.mrb[0].mxu0
  %v403 = vadd.f32 %v297, %v402
  %404 = vmatprep.mubr.bf16.mxu0 0
  %405 = vmatmul.mubr.bf16.gmra.mrb[0].mxu0 %v347
  %v406 = vpop.f32.mrb[0].mxu0
  %v407 = vadd.f32 %v302, %v406
  %v408 = vpop.f32.mrb[0].mxu0
  %v409 = vadd.f32 %v302, %v408
  %v410 = vpop.f32.mrb[0].mxu0
  %v411 = vadd.f32 %v307, %v410
  %v412 = vpop.f32.mrb[0].mxu0
  %v413 = vadd.f32 %v307, %v412
  %414 = vmatprep.mubr.bf16.mxu0 0
  %415 = vmatmul.mubr.bf16.gmra.mrb[0].mxu0 %v350
  %v416 = vpop.f32.mrb[0].mxu0
  %v417 = vadd.f32 %v312, %v416
  %v418 = vpop.f32.mrb[0].mxu0
  %v419 = vadd.f32 %v312, %v418
  %v420 = vpop.f32.mrb[0].mxu0
  %v421 = vadd.f32 %v317, %v420
  %v422 = vpop.f32.mrb[0].mxu0
  %v423 = vadd.f32 %v317, %v422
  %424 = vdwg.mxu0
  %425 = vmatprep.subr.bf16.mxu0 %v266
  %426 = vmatpush1.bf16.msra.mxu0 %v265
  %427 = vmatprep.subr.bf16.mxu0 %v270
  %428 = vmatpush1.bf16.msra.mxu0 %v269
  %429 = vmatprep.subr.bf16.mxu0 0
  %430 = vmatpush1.bf16.msra.mxu0 0
  %431 = vmatprep.subr.bf16.mxu0 0
  %432 = vmatpush1.bf16.msra.mxu0 0
  %433 = vmatprep.subr.bf16.mxu0 0
  %434 = vmatpush1.bf16.msra.mxu0 0
  %435 = vmatprep.subr.bf16.mxu0 0
  %436 = vmatpush1.bf16.msra.mxu0 0
  %437 = vmatprep.subr.bf16.mxu0 0
  %438 = vmatpush1.bf16.msra.mxu0 0
  %439 = vmatprep.subr.bf16.mxu0 0
  %440 = vmatpush1.bf16.msra.mxu0 0
  %441 = vmatprep.subr.bf16.mxu0 0
  %442 = vmatpush1.bf16.msra.mxu0 0
  %443 = vmatprep.subr.bf16.mxu0 0
  %444 = vmatpush1.bf16.msra.mxu0 0
  %445 = vmatprep.subr.bf16.mxu0 0
  %446 = vmatpush1.bf16.msra.mxu0 0
  %447 = vmatprep.subr.bf16.mxu0 0
  %448 = vmatpush1.bf16.msra.mxu0 0
  %449 = vmatprep.subr.bf16.mxu0 0
  %450 = vmatpush1.bf16.msra.mxu0 0
  %451 = vmatprep.subr.bf16.mxu0 0
  %452 = vmatpush1.bf16.msra.mxu0 0
  %453 = vmatprep.subr.bf16.mxu0 0
  %454 = vmatpush1.bf16.msra.mxu0 0
  %455 = vmatprep.subr.bf16.mxu0 0
  %456 = vmatpush1.bf16.msra.mxu0 0
  %457 = vmatprep.mubr.bf16.mxu0 0
  %458 = vmatmul.mubr.bf16.gmra.mrb[0].mxu0 %v341
  %v459 = vpop.f32.mrb[0].mxu0
  %v460 = vadd.f32 %v282, %v459
  %v461 = vpop.f32.mrb[0].mxu0
  %v462 = vadd.f32 %v282, %v461
  %v463 = vpop.f32.mrb[0].mxu0
  %v464 = vadd.f32 %v287, %v463
  %v465 = vpop.f32.mrb[0].mxu0
  %v466 = vadd.f32 %v287, %v465
  %467 = vmatprep.mubr.bf16.mxu0 0
  %468 = vmatmul.mubr.bf16.gmra.mrb[0].mxu0 %v344
  %v469 = vpop.f32.mrb[0].mxu0
  %v470 = vadd.f32 %v292, %v469
  %v471 = vpop.f32.mrb[0].mxu0
  %v472 = vadd.f32 %v292, %v471
  %v473 = vpop.f32.mrb[0].mxu0
  %v474 = vadd.f32 %v297, %v473
  %v475 = vpop.f32.mrb[0].mxu0
  %v476 = vadd.f32 %v297, %v475
  %477 = vmatprep.mubr.bf16.mxu0 0
  %478 = vmatmul.mubr.bf16.gmra.mrb[0].mxu0 %v347
  %v479 = vpop.f32.mrb[0].mxu0
  %v480 = vadd.f32 %v302, %v479
  %v481 = vpop.f32.mrb[0].mxu0
  %v482 = vadd.f32 %v302, %v481
  %v483 = vpop.f32.mrb[0].mxu0
  %v484 = vadd.f32 %v307, %v483
  %v485 = vpop.f32.mrb[0].mxu0
  %v486 = vadd.f32 %v307, %v485
  %487 = vmatprep.mubr.bf16.mxu0 0
  %488 = vmatmul.mubr.bf16.gmra.mrb[0].mxu0 %v350
  %v489 = vpop.f32.mrb[0].mxu0
  %v490 = vadd.f32 %v312, %v489
  %v491 = vpop.f32.mrb[0].mxu0
  %v492 = vadd.f32 %v312, %v491
  %v493 = vpop.f32.mrb[0].mxu0
  %v494 = vadd.f32 %v317, %v493
  %v495 = vpop.f32.mrb[0].mxu0
  %v496 = vadd.f32 %v317, %v495
  %497 = vdwg.mxu0
  %vm498 = vcmp.ge.f32.partialorder %v387, 0.0
  %vm499 = vcmp.ge.f32.partialorder %v389, 0.0
  %vm500 = vcmp.ge.f32.partialorder %v460, 0.0
  %vm501 = vcmp.ge.f32.partialorder %v462, 0.0
  %vm502 = vcmp.ge.f32.partialorder %v391, 0.0
  %vm503 = vcmp.ge.f32.partialorder %v393, 0.0
  %vm504 = vcmp.ge.f32.partialorder %v464, 0.0
  %vm505 = vcmp.ge.f32.partialorder %v466, 0.0
  %vm506 = vcmp.ge.f32.partialorder %v397, 0.0
  %vm507 = vcmp.ge.f32.partialorder %v399, 0.0
  %vm508 = vcmp.ge.f32.partialorder %v470, 0.0
  %vm509 = vcmp.ge.f32.partialorder %v472, 0.0
  %vm510 = vcmp.ge.f32.partialorder %v401, 0.0
  %vm511 = vcmp.ge.f32.partialorder %v403, 0.0
  %vm512 = vcmp.ge.f32.partialorder %v474, 0.0
  %vm513 = vcmp.ge.f32.partialorder %v476, 0.0
  %vm514 = vcmp.ge.f32.partialorder %v407, 0.0
  %vm515 = vcmp.ge.f32.partialorder %v409, 0.0
  %vm516 = vcmp.ge.f32.partialorder %v480, 0.0
  %vm517 = vcmp.ge.f32.partialorder %v482, 0.0
  %vm518 = vcmp.ge.f32.partialorder %v411, 0.0
  %vm519 = vcmp.ge.f32.partialorder %v413, 0.0
  %vm520 = vcmp.ge.f32.partialorder %v484, 0.0
  %vm521 = vcmp.ge.f32.partialorder %v486, 0.0
  %vm522 = vcmp.ge.f32.partialorder %v417, 0.0
  %vm523 = vcmp.ge.f32.partialorder %v419, 0.0
  %vm524 = vcmp.ge.f32.partialorder %v490, 0.0
  %vm525 = vcmp.ge.f32.partialorder %v492, 0.0
  %vm526 = vcmp.ge.f32.partialorder %v421, 0.0
  %vm527 = vcmp.ge.f32.partialorder %v423, 0.0
  %vm528 = vcmp.ge.f32.partialorder %v494, 0.0
  %vm529 = vcmp.ge.f32.partialorder %v496, 0.0
  %v530 = vmul.f32 %v387, 0.2
  %v531 = vmul.f32 %v389, 0.2
  %v532 = vmul.f32 %v460, 0.2
  %v533 = vmul.f32 %v462, 0.2
  %v534 = vmul.f32 %v391, 0.2
  %v535 = vmul.f32 %v393, 0.2
  %v536 = vmul.f32 %v464, 0.2
  %v537 = vmul.f32 %v466, 0.2
  %v538 = vmul.f32 %v397, 0.2
  %v539 = vmul.f32 %v399, 0.2
  %v540 = vmul.f32 %v470, 0.2
  %v541 = vmul.f32 %v472, 0.2
  %v542 = vmul.f32 %v401, 0.2
  %v543 = vmul.f32 %v403, 0.2
  %v544 = vmul.f32 %v474, 0.2
  %v545 = vmul.f32 %v476, 0.2
  %v546 = vmul.f32 %v407, 0.2
  %v547 = vmul.f32 %v409, 0.2
  %v548 = vmul.f32 %v480, 0.2
  %v549 = vmul.f32 %v482, 0.2
  %v550 = vmul.f32 %v411, 0.2
  %v551 = vmul.f32 %v413, 0.2
  %v552 = vmul.f32 %v484, 0.2
  %v553 = vmul.f32 %v486, 0.2
  %v554 = vmul.f32 %v417, 0.2
  %v555 = vmul.f32 %v419, 0.2
  %v556 = vmul.f32 %v490, 0.2
  %v557 = vmul.f32 %v492, 0.2
  %v558 = vmul.f32 %v421, 0.2
  %v559 = vmul.f32 %v423, 0.2
  %v560 = vmul.f32 %v494, 0.2
  %v561 = vmul.f32 %v496, 0.2
  %v562 = vsel %vm498, %v387, %v530
  %v563 = vsel %vm499, %v389, %v531
  %v564 = vsel %vm500, %v460, %v532
  %v565 = vsel %vm501, %v462, %v533
  %v566 = vsel %vm502, %v391, %v534
  %v567 = vsel %vm503, %v393, %v535
  %v568 = vsel %vm504, %v464, %v536
  %v569 = vsel %vm505, %v466, %v537
  %v570 = vsel %vm506, %v397, %v538
  %v571 = vsel %vm507, %v399, %v539
  %v572 = vsel %vm508, %v470, %v540
  %v573 = vsel %vm509, %v472, %v541
  %v574 = vsel %vm510, %v401, %v542
  %v575 = vsel %vm511, %v403, %v543
  %v576 = vsel %vm512, %v474, %v544
  %v577 = vsel %vm513, %v476, %v545
  %v578 = vsel %vm514, %v407, %v546
  %v579 = vsel %vm515, %v409, %v547
  %v580 = vsel %vm516, %v480, %v548
  %v581 = vsel %vm517, %v482, %v549
  %v582 = vsel %vm518, %v411, %v550
  %v583 = vsel %vm519, %v413, %v551
  %v584 = vsel %vm520, %v484, %v552
  %v585 = vsel %vm521, %v486, %v553
  %v586 = vsel %vm522, %v417, %v554
  %v587 = vsel %vm523, %v419, %v555
  %v588 = vsel %vm524, %v490, %v556
  %v589 = vsel %vm525, %v492, %v557
  %v590 = vsel %vm526, %v421, %v558
  %v591 = vsel %vm527, %v423, %v559
  %v592 = vsel %vm528, %v494, %v560
  %v593 = vsel %vm529, %v496, %v561
  %v594 = vld [vmem:[%s5] sm:$0x1]
  %v595 = vpack.c.bf16 %v566, %v562
  %v596 = vpack.c.bf16 %v567, %v563
  %v597 = vpack.c.bf16 %v568, %v564
  %v598 = vpack.c.bf16 %v569, %v565
  %v599 = vpack.c.bf16 %v574, %v570
  %v600 = vpack.c.bf16 %v575, %v571
  %v601 = vpack.c.bf16 %v576, %v572
  %v602 = vpack.c.bf16 %v577, %v573
  %v603 = vpack.c.bf16 %v582, %v578
  %v604 = vpack.c.bf16 %v583, %v579
  %v605 = vpack.c.bf16 %v584, %v580
  %v606 = vpack.c.bf16 %v585, %v581
  %v607 = vpack.c.bf16 %v590, %v586
  %v608 = vpack.c.bf16 %v591, %v587
  %v609 = vpack.c.bf16 %v592, %v588
  %v610 = vpack.c.bf16 %v593, %v589
  %vm611 = vcmask 523264
  %v613 = vsel %vm611, %v594, 0
  %615 = vmatprep.subr.bf16.mxu0 %v596
  %616 = vmatpush1.bf16.msra.mxu0 %v595
  %617 = vmatprep.subr.bf16.mxu0 %v600
  %618 = vmatpush1.bf16.msra.mxu0 %v599
  %619 = vmatprep.subr.bf16.mxu0 %v604
  %620 = vmatpush1.bf16.msra.mxu0 %v603
  %621 = vmatprep.subr.bf16.mxu0 %v608
  %622 = vmatpush1.bf16.msra.mxu0 %v607
  %623 = vmatprep.subr.bf16.mxu0 0
  %624 = vmatpush1.bf16.msra.mxu0 0
  %625 = vmatprep.subr.bf16.mxu0 0
  %626 = vmatpush1.bf16.msra.mxu0 0
  %627 = vmatprep.subr.bf16.mxu0 0
  %628 = vmatpush1.bf16.msra.mxu0 0
  %629 = vmatprep.subr.bf16.mxu0 0
  %630 = vmatpush1.bf16.msra.mxu0 0
  %631 = vmatprep.subr.bf16.mxu0 0
  %632 = vmatpush1.bf16.msra.mxu0 0
  %633 = vmatprep.subr.bf16.mxu0 0
  %634 = vmatpush1.bf16.msra.mxu0 0
  %635 = vmatprep.subr.bf16.mxu0 0
  %636 = vmatpush1.bf16.msra.mxu0 0
  %637 = vmatprep.subr.bf16.mxu0 0
  %638 = vmatpush1.bf16.msra.mxu0 0
  %639 = vmatprep.subr.bf16.mxu0 0
  %640 = vmatpush1.bf16.msra.mxu0 0
  %641 = vmatprep.subr.bf16.mxu0 0
  %642 = vmatpush1.bf16.msra.mxu0 0
  %643 = vmatprep.subr.bf16.mxu0 0
  %644 = vmatpush1.bf16.msra.mxu0 0
  %645 = vmatprep.subr.bf16.mxu0 0
  %646 = vmatpush1.bf16.msra.mxu0 0
  %647 = vmatprep.mubr.bf16.mxu0 0
  %648 = vmatmul.mubr.bf16.gmra.mrb[0].mxu0 %v613
  %v649 = vpop.f32.mrb[0].mxu0
  %v650 = vadd.f32 0.0, %v649
  %v651 = vpop.f32.mrb[0].mxu0
  %v652 = vadd.f32 0.0, %v651
  %v653 = vpop.f32.mrb[0].mxu0
  %v654 = vpop.f32.mrb[0].mxu0
  %655 = vdwg.mxu0
  %656 = vmatprep.subr.bf16.mxu0 %v598
  %657 = vmatpush1.bf16.msra.mxu0 %v597
  %658 = vmatprep.subr.bf16.mxu0 %v602
  %659 = vmatpush1.bf16.msra.mxu0 %v601
  %660 = vmatprep.subr.bf16.mxu0 %v606
  %661 = vmatpush1.bf16.msra.mxu0 %v605
  %662 = vmatprep.subr.bf16.mxu0 %v610
  %663 = vmatpush1.bf16.msra.mxu0 %v609
  %664 = vmatprep.subr.bf16.mxu0 0
  %665 = vmatpush1.bf16.msra.mxu0 0
  %666 = vmatprep.subr.bf16.mxu0 0
  %667 = vmatpush1.bf16.msra.mxu0 0
  %668 = vmatprep.subr.bf16.mxu0 0
  %669 = vmatpush1.bf16.msra.mxu0 0
  %670 = vmatprep.subr.bf16.mxu0 0
  %671 = vmatpush1.bf16.msra.mxu0 0
  %672 = vmatprep.subr.bf16.mxu0 0
  %673 = vmatpush1.bf16.msra.mxu0 0
  %674 = vmatprep.subr.bf16.mxu0 0
  %675 = vmatpush1.bf16.msra.mxu0 0
  %676 = vmatprep.subr.bf16.mxu0 0
  %677 = vmatpush1.bf16.msra.mxu0 0
  %678 = vmatprep.subr.bf16.mxu0 0
  %679 = vmatpush1.bf16.msra.mxu0 0
  %680 = vmatprep.subr.bf16.mxu0 0
  %681 = vmatpush1.bf16.msra.mxu0 0
  %682 = vmatprep.subr.bf16.mxu0 0
  %683 = vmatpush1.bf16.msra.mxu0 0
  %684 = vmatprep.subr.bf16.mxu0 0
  %685 = vmatpush1.bf16.msra.mxu0 0
  %686 = vmatprep.subr.bf16.mxu0 0
  %687 = vmatpush1.bf16.msra.mxu0 0
  %688 = vmatprep.mubr.bf16.mxu0 0
  %689 = vmatmul.mubr.bf16.gmra.mrb[0].mxu0 %v613
  %v690 = vpop.f32.mrb[0].mxu0
  %v691 = vadd.f32 0.0, %v690
  %v692 = vpop.f32.mrb[0].mxu0
  %v693 = vadd.f32 0.0, %v692
  %v694 = vpop.f32.mrb[0].mxu0
  %v695 = vpop.f32.mrb[0].mxu0
  %696 = vdwg.mxu0
  %v701 = vcombine.low %v650, %v652
  %v702 = vcombine.low %v691, %v693
  %v704 = vunpack.c.l.s4 1966171168
  %v705 = vunpack.c.0.s8 %v704
  %v706 = vlaneseq
  %v707 = vshrl.u32 %v706, 7
  %v708 = vsub.s32 %v705, %v707
  %v709 = vrot.slane %v701, %v708
  %v711 = vunpack.c.l.s4 1966171168
  %v712 = vunpack.c.0.s8 %v711
  %v713 = vlaneseq
  %v714 = vshrl.u32 %v713, 7
  %v715 = vsub.s32 %v712, %v714
  %v716 = vrot.slane %v702, %v715
  %v717 = vcombine.low %v709, %v716
  %v719 = vunpack.c.l.s4 1966171168
  %v720 = vunpack.c.0.s8 %v719
  %v721 = vlaneseq
  %v722 = vshrl.u32 %v721, 7
  %v723 = vsub.s32 %v720, %v722
  %v724 = vrot.slane %v717, %v723
  %v726 = vlaneseq
  %vm727 = vcmp.ge.s32.totalorder %v726, 0
  %vm728 = vcmp.lt.s32.totalorder %v726, 512
  %vm729 = vmand %vm727, %vm728
  %730 = vst.msk [vmem:[%s6] sm:$0xf] %vm729, %v724
  // Predicated region
  $region26: #{pixel_discriminator_forward.3} parent=0 // pred_check
    _
  $region27: #{pixel_discriminator_forward.3} parent=0 // pred_check_branch
    %732 = sbr.rel (0) target = $region29
  $region28: #{pixel_discriminator_forward.3} parent=0 // pred_region
    _
  $region29: #{pixel_discriminator_forward.3} parent=0 // pred_fallthru
    _
  // Predicated region
  $region30: #{pixel_discriminator_forward.3} parent=0 // pred_check
    _
  $region31: #{pixel_discriminator_forward.3} parent=0 // pred_check_branch
    %734 = sbr.rel (0) target = $region33
  $region32: #{pixel_discriminator_forward.3} parent=0 // pred_region
    _
  $region33: #{pixel_discriminator_forward.3} parent=0 // pred_fallthru
    _

</llo_original>
